<compile_context>
chip_gen: v6e
topology: v6e:2x2x1
jax: 0.10.0
libtpu: 0.0.40
codegen_flags: <defaults>
</compile_context>

<pallas_src>
import math
from functools import partial

import numpy as np
import jax
import jax.numpy as jnp
from jax import lax
from jax.experimental import pallas as pl
from jax.experimental.pallas import tpu as pltpu

SHIFT_SIZE = 5
PAD = SHIFT_SIZE // 2
LN_EPS = 1e-5


def _shifted_block_kernel(x_ref, gamma_ref, beta_ref, w1_ref, b1_ref,
                          dww_ref, dwb_ref, w2_ref, b2_ref, o_ref,
                          *, H, W, C, hidden):
    N = H * W
    x = x_ref[0]                                        # (C, N) f32, channel-major

    # ---------------- LayerNorm over channels (sublane axis) ----------------
    mu = jnp.mean(x, axis=0, keepdims=True)             # (1, N)
    xc = x - mu
    var = jnp.mean(xc * xc, axis=0, keepdims=True)
    y = xc * lax.rsqrt(var + LN_EPS)
    y = y * gamma_ref[...] + beta_ref[...]              # (C,1) broadcast over lanes

    # torch.chunk(x, 5, dim=channel): chunk = ceil(C/5); channels in chunk ci
    # get spatial shift s = ci - PAD, applied with zero fill.
    chunk = -(-C // SHIFT_SIZE)
    bounds = [(ci * chunk, min((ci + 1) * chunk, C), ci - PAD)
              for ci in range(SHIFT_SIZE) if ci * chunk < C]

    w_idx = lax.broadcasted_iota(jnp.int32, (1, N), 1) % W   # w coordinate per token

    def pad_lanes(a, p):                                 # zero-pad along lane (token) axis
        z = jnp.zeros((a.shape[0], p), a.dtype)
        return jnp.concatenate([z, a, z], axis=1)

    # ---------------- shift along H (per chunk: lane shift by s*W) ----------------
    # out[c, h*W+w] = y[c, (h-s)*W+w] with zero fill -> flat lane shift by s*W.
    yp = pad_lanes(y, PAD * W)                           # (C, N + 2*PAD*W)
    parts = []
    for (c0, c1, s) in bounds:
        start = PAD * W - s * W
        parts.append(lax.slice(yp, (c0, start), (c1, start + N)))
    y_s = jnp.concatenate(parts, axis=0)                 # (C, N)

    # ---------------- fc1: (hidden, C) @ (C, N) -> lane-dense (hidden, N) ----------------
    h1 = jnp.dot(w1_ref[...], y_s.astype(jnp.bfloat16),
                 preferred_element_type=jnp.float32) + b1_ref[...]

    # ---------------- depthwise 3x3 conv (stride 1, pad 1, bias) ----------------
    # pad once along the flat token axis; h-boundary handled by the zero pad,
    # w-boundary handled by two precomputed float edge masks.
    w9 = dww_ref[...]                                    # (hidden, 9), taps (kh,kw) row-major
    mask_l = (w_idx >= 1).astype(jnp.float32)            # w-1 in range
    mask_r = (w_idx < W - 1).astype(jnp.float32)         # w+1 in range
    PADF = W + 1
    h1p = pad_lanes(h1, PADF)                            # (hidden, N + 2*(W+1))
    acc = jnp.zeros((hidden, N), jnp.float32)
    for dh in (-1, 0, 1):
        for dw in (-1, 0, 1):
            off = dh * W + dw
            sl = lax.slice(h1p, (0, PADF + off), (hidden, PADF + off + N))
            if dw == -1:
                sl = sl * mask_l
            elif dw == 1:
                sl = sl * mask_r
            k = (dh + 1) * 3 + (dw + 1)
            acc = acc + sl * w9[:, k:k + 1]              # per-channel tap, broadcast over lanes
    acc = acc + dwb_ref[...]

    # ---------------- Mish with a single exp ----------------
    # tanh(softplus(x)) = (t^2+2t)/(t^2+2t+2) with t=e^x; use t=e^{-|x|} for stability.
    t = jnp.exp(-jnp.abs(acc))
    t2 = t * t
    pos = acc >= 0
    num = jnp.where(pos, 1.0 + 2.0 * t, t2 + 2.0 * t)
    den = num + jnp.where(pos, 2.0 * t2, 2.0)
    m = acc * num * pl.reciprocal(den, approx=True)

    # ---------------- shift along W (per chunk: lane shift by s + row-edge mask) ----------------
    mp = pad_lanes(m, PAD)                               # (hidden, N + 2*PAD)
    parts = []
    for (c0, c1, s) in bounds:
        start = PAD - s
        sl = lax.slice(mp, (c0, start), (c1, start + N))
        if s > 0:
            sl = jnp.where(w_idx >= s, sl, 0.0)          # zero where w - s < 0
        elif s < 0:
            sl = jnp.where(w_idx < W + s, sl, 0.0)       # zero where w - s >= W
        parts.append(sl)
    m_s = jnp.concatenate(parts, axis=0)                 # (hidden, N)

    # ---------------- fc2 + residual ----------------
    out = jnp.dot(w2_ref[...], m_s.astype(jnp.bfloat16),
                  preferred_element_type=jnp.float32) + b2_ref[...]
    o_ref[0] = x + out                                   # lane-dense (C, N) store


def shifted_block_forward(x_tokens, H, W, params):
    """x_tokens: (B, N, C) with N == H*W."""
    B, N, C = x_tokens.shape
    assert N == H * W
    hidden = params["w1"].shape[1]
    assert hidden == C, "PyTorch forward requires hidden_features == dim (mlp_ratio=1)"

    # channel-major layout: tokens on the lane axis.
    x_cm = jnp.transpose(x_tokens, (0, 2, 1))            # (B, C, N)

    gamma = params["gamma"].reshape(C, 1)
    beta = params["beta"].reshape(C, 1)
    w1 = jnp.transpose(params["w1"]).astype(jnp.bfloat16)    # (hidden, C)
    b1 = params["b1"].reshape(hidden, 1)
    dww = params["dw_w"].reshape(hidden, 9)                  # taps (kh,kw) row-major
    dwb = params["dw_b"].reshape(hidden, 1)
    w2 = jnp.transpose(params["w2"]).astype(jnp.bfloat16)    # (C, hidden)
    b2 = params["b2"].reshape(C, 1)

    kernel = partial(_shifted_block_kernel, H=H, W=W, C=C, hidden=hidden)

    def full(shape):
        return pl.BlockSpec(shape, lambda b, _n=len(shape): (0,) * _n)

    out_cm = pl.pallas_call(
        kernel,
        out_shape=jax.ShapeDtypeStruct((B, C, N), jnp.float32),
        grid=(B,),
        in_specs=[
            pl.BlockSpec((1, C, N), lambda b: (b, 0, 0)),
            full((C, 1)), full((C, 1)),
            full((hidden, C)), full((hidden, 1)),
            full((hidden, 9)), full((hidden, 1)),
            full((C, hidden)), full((C, 1)),
        ],
        out_specs=pl.BlockSpec((1, C, N), lambda b: (b, 0, 0)),
        compiler_params=pltpu.CompilerParams(dimension_semantics=("parallel",)),
    )(x_cm, gamma, beta, w1, b1, dww, dwb, w2, b2)
    return jnp.transpose(out_cm, (0, 2, 1)).reshape(B, N, C)


# ------------------------- pure-JAX reference -------------------------
def ref_forward(x_tokens, H, W, params):
    B, N, C = x_tokens.shape
    hidden = params["w1"].shape[1]
    x = x_tokens
    mu = jnp.mean(x, -1, keepdims=True)
    var = jnp.mean((x - mu) ** 2, -1, keepdims=True)
    y = (x - mu) / jnp.sqrt(var + LN_EPS) * params["gamma"] + params["beta"]
    y = y.reshape(B, H, W, C)

    def ref_shift(a, axis):  # a: (B, H, W, nC); axis 1 = H, 2 = W
        nC = a.shape[-1]
        chunk = -(-nC // SHIFT_SIZE)
        apad = jnp.pad(a, ((0, 0), (PAD, PAD), (PAD, PAD), (0, 0)))
        cols = [jnp.roll(apad[..., c], c // chunk - PAD, axis=axis) for c in range(nC)]
        acat = jnp.stack(cols, axis=-1)
        return acat[:, PAD:PAD + H, PAD:PAD + W, :]

    y = ref_shift(y, axis=1)                            # shift along H
    h1 = y.reshape(B, N, C) @ params["w1"] + params["b1"]
    h1 = h1.reshape(B, H, W, hidden)
    dw = lax.conv_general_dilated(
        h1, jnp.transpose(params["dw_w"], (2, 3, 1, 0)),
        window_strides=(1, 1), padding="SAME",
        dimension_numbers=("NHWC", "HWIO", "NHWC"),
        feature_group_count=hidden) + params["dw_b"]
    m = dw * jnp.tanh(jax.nn.softplus(dw))
    m = ref_shift(m, axis=2)                            # shift along W
    out = m.reshape(B, N, hidden) @ params["w2"] + params["b2"]
    return x_tokens + out


if __name__ == "__main__":
    B, H, W = 2, 16, 16
    dim = 20                      # divisible by shift_size for clean chunks
    mlp_ratio = 1.0               # required for the forward to type-check
    hidden = int(dim * mlp_ratio)
    N = H * W

    key = jax.random.PRNGKey(0)
    kx, k1, k2, k3 = jax.random.split(key, 4)

    params = dict(
        gamma=jnp.ones((dim,), jnp.float32),            # LayerNorm weight init = 1
        beta=jnp.zeros((dim,), jnp.float32),            # LayerNorm bias   init = 0
        w1=jax.random.normal(k1, (dim, hidden), jnp.float32) * 0.02,   # trunc_normal std 0.02
        b1=jnp.zeros((hidden,), jnp.float32),
        dw_w=jax.random.normal(k2, (hidden, 1, 3, 3), jnp.float32) * math.sqrt(2.0 / 9.0),
        dw_b=jnp.zeros((hidden,), jnp.float32),
        w2=jax.random.normal(k3, (hidden, dim), jnp.float32) * 0.02,
        b2=jnp.zeros((dim,), jnp.float32),
    )

    x = jax.random.normal(kx, (B, N, dim), jnp.float32)

    out = shifted_block_forward(x, H, W, params)
    out = jax.block_until_ready(out)

    ref = jax.block_until_ready(ref_forward(x, H, W, params))
    np.testing.assert_allclose(np.asarray(out), np.asarray(ref), rtol=1e-3, atol=1e-3)

    print("KERNEL_OK")
</pallas_src>

<mosaic_0001>
module attributes {stable_mosaic.version = 11 : i64} {
  func.func @_shifted_block_kernel(%arg0: i32, %arg1: memref<1x20x256xf32, #tpu.memory_space<vmem>>, %arg2: memref<20x1xf32, #tpu.memory_space<vmem>>, %arg3: memref<20x1xf32, #tpu.memory_space<vmem>>, %arg4: memref<20x20xbf16, #tpu.memory_space<vmem>>, %arg5: memref<20x1xf32, #tpu.memory_space<vmem>>, %arg6: memref<20x9xf32, #tpu.memory_space<vmem>>, %arg7: memref<20x1xf32, #tpu.memory_space<vmem>>, %arg8: memref<20x20xbf16, #tpu.memory_space<vmem>>, %arg9: memref<20x1xf32, #tpu.memory_space<vmem>>, %arg10: memref<1x20x256xf32, #tpu.memory_space<vmem>>) attributes {dimension_semantics = [#tpu.dimension_semantics<parallel>], iteration_bounds = array<i64: 2>, scalar_prefetch = 0 : i64, scratch_operands = 0 : i64, tpu.core_type = #tpu.core_type<tc>, window_params = [{transform_indices = @transform_0, window_bounds = array<i64: 1, 20, 256>}, {pipeline_mode = #tpu.pipeline_mode<synchronous>, transform_indices = @transform_1, window_bounds = array<i64: 20, 1>}, {pipeline_mode = #tpu.pipeline_mode<synchronous>, transform_indices = @transform_2, window_bounds = array<i64: 20, 1>}, {pipeline_mode = #tpu.pipeline_mode<synchronous>, transform_indices = @transform_3, window_bounds = array<i64: 20, 20>}, {pipeline_mode = #tpu.pipeline_mode<synchronous>, transform_indices = @transform_4, window_bounds = array<i64: 20, 1>}, {pipeline_mode = #tpu.pipeline_mode<synchronous>, transform_indices = @transform_5, window_bounds = array<i64: 20, 9>}, {pipeline_mode = #tpu.pipeline_mode<synchronous>, transform_indices = @transform_6, window_bounds = array<i64: 20, 1>}, {pipeline_mode = #tpu.pipeline_mode<synchronous>, transform_indices = @transform_7, window_bounds = array<i64: 20, 20>}, {pipeline_mode = #tpu.pipeline_mode<synchronous>, transform_indices = @transform_8, window_bounds = array<i64: 20, 1>}, {transform_indices = @transform_9, window_bounds = array<i64: 1, 20, 256>}]} {
    %c0 = arith.constant 0 : index
    %c0_0 = arith.constant 0 : index
    %c0_1 = arith.constant 0 : index
    %0 = vector.load %arg1[%c0, %c0_0, %c0_1] : memref<1x20x256xf32, #tpu.memory_space<vmem>>, vector<1x20x256xf32>
    %1 = vector.shape_cast %0 : vector<1x20x256xf32> to vector<20x256xf32>
    %cst = arith.constant dense<0.000000e+00> : vector<256xf32>
    %2 = vector.multi_reduction <add>, %1, %cst [0] : vector<20x256xf32> to vector<256xf32>
    %3 = vector.shape_cast %2 : vector<256xf32> to vector<1x256xf32>
    %cst_2 = arith.constant 2.000000e+01 : f32
    %4 = vector.broadcast %cst_2 : f32 to vector<1x256xf32>
    %5 = arith.divf %3, %4 : vector<1x256xf32>
    %6 = vector.broadcast %5 : vector<1x256xf32> to vector<20x256xf32>
    %7 = arith.subf %1, %6 : vector<20x256xf32>
    %8 = arith.mulf %7, %7 : vector<20x256xf32>
    %cst_3 = arith.constant dense<0.000000e+00> : vector<256xf32>
    %9 = vector.multi_reduction <add>, %8, %cst_3 [0] : vector<20x256xf32> to vector<256xf32>
    %10 = vector.shape_cast %9 : vector<256xf32> to vector<1x256xf32>
    %cst_4 = arith.constant 2.000000e+01 : f32
    %11 = vector.broadcast %cst_4 : f32 to vector<1x256xf32>
    %12 = arith.divf %10, %11 : vector<1x256xf32>
    %cst_5 = arith.constant 9.99999974E-6 : f32
    %13 = vector.broadcast %cst_5 : f32 to vector<1x256xf32>
    %14 = arith.addf %12, %13 : vector<1x256xf32>
    %15 = math.rsqrt %14 : vector<1x256xf32>
    %16 = vector.broadcast %15 : vector<1x256xf32> to vector<20x256xf32>
    %17 = arith.mulf %7, %16 : vector<20x256xf32>
    %c0_6 = arith.constant 0 : index
    %c0_7 = arith.constant 0 : index
    %18 = vector.load %arg2[%c0_6, %c0_7] : memref<20x1xf32, #tpu.memory_space<vmem>>, vector<20x1xf32>
    %19 = vector.broadcast %18 : vector<20x1xf32> to vector<20x256xf32>
    %20 = arith.mulf %17, %19 : vector<20x256xf32>
    %c0_8 = arith.constant 0 : index
    %c0_9 = arith.constant 0 : index
    %21 = vector.load %arg3[%c0_8, %c0_9] : memref<20x1xf32, #tpu.memory_space<vmem>>, vector<20x1xf32>
    %22 = vector.broadcast %21 : vector<20x1xf32> to vector<20x256xf32>
    %23 = arith.addf %20, %22 : vector<20x256xf32>
    %24 = tpu.iota {dimensions = array<i32: 1>} : vector<1x256xi32>
    %c16_i32 = arith.constant 16 : i32
    %c0_i32 = arith.constant 0 : i32
    %25 = arith.cmpi eq, %c16_i32, %c0_i32 : i32
    %c1_i32 = arith.constant 1 : i32
    %26 = arith.select %25, %c1_i32, %c16_i32 : i32
    %27 = vector.broadcast %26 : i32 to vector<1x256xi32>
    %28 = arith.remsi %24, %27 : vector<1x256xi32>
    %c0_i32_10 = arith.constant 0 : i32
    %29 = vector.broadcast %c0_i32_10 : i32 to vector<1x256xi32>
    %30 = arith.cmpi ne, %28, %29 : vector<1x256xi32>
    %c0_i32_11 = arith.constant 0 : i32
    %31 = vector.broadcast %c0_i32_11 : i32 to vector<1x256xi32>
    %32 = arith.cmpi slt, %28, %31 : vector<1x256xi32>
    %c0_i32_12 = arith.constant 0 : i32
    %33 = arith.cmpi slt, %26, %c0_i32_12 : i32
    %34 = vector.broadcast %33 : i1 to vector<1x256xi1>
    %35 = vector.broadcast %34 : vector<1x256xi1> to vector<1x256xi1>
    %36 = arith.xori %32, %35 : vector<1x256xi1>
    %37 = arith.andi %36, %30 : vector<1x256xi1>
    %38 = vector.broadcast %26 : i32 to vector<1x256xi32>
    %39 = arith.addi %28, %38 : vector<1x256xi32>
    %40 = arith.select %37, %39, %28 : vector<1x256xi1>, vector<1x256xi32>
    %cst_13 = arith.constant 0.000000e+00 : f32
    %41 = vector.broadcast %cst_13 : f32 to vector<20x32xf32>
    %42 = tpu.concatenate %41, %23, %41 in 1 : vector<20x32xf32>, vector<20x256xf32>, vector<20x32xf32> -> vector<20x320xf32>
    %43 = vector.extract_strided_slice %42 {offsets = [0, 64], sizes = [4, 256], strides = [1, 1]} : vector<20x320xf32> to vector<4x256xf32>
    %44 = vector.extract_strided_slice %42 {offsets = [4, 48], sizes = [4, 256], strides = [1, 1]} : vector<20x320xf32> to vector<4x256xf32>
    %45 = vector.extract_strided_slice %42 {offsets = [8, 32], sizes = [4, 256], strides = [1, 1]} : vector<20x320xf32> to vector<4x256xf32>
    %46 = vector.extract_strided_slice %42 {offsets = [12, 16], sizes = [4, 256], strides = [1, 1]} : vector<20x320xf32> to vector<4x256xf32>
    %47 = vector.extract_strided_slice %42 {offsets = [16, 0], sizes = [4, 256], strides = [1, 1]} : vector<20x320xf32> to vector<4x256xf32>
    %48 = tpu.concatenate %43, %44, %45, %46, %47 in 0 : vector<4x256xf32>, vector<4x256xf32>, vector<4x256xf32>, vector<4x256xf32>, vector<4x256xf32> -> vector<20x256xf32>
    %c0_14 = arith.constant 0 : index
    %c0_15 = arith.constant 0 : index
    %49 = vector.load %arg4[%c0_14, %c0_15] : memref<20x20xbf16, #tpu.memory_space<vmem>>, vector<20x20xbf16>
    %50 = arith.truncf %48 : vector<20x256xf32> to vector<20x256xbf16>
    %cst_16 = arith.constant dense<0.000000e+00> : vector<20x256xf32>
    %51 = tpu.matmul %49, %50, %cst_16 {dimension_numbers = #tpu.dot_dimension_numbers<[1], [0], [0], [1], [0, 0, 1, 1], [], []>} : vector<20x20xbf16>, vector<20x256xbf16>, vector<20x256xf32> -> vector<20x256xf32>
    %c0_17 = arith.constant 0 : index
    %c0_18 = arith.constant 0 : index
    %52 = vector.load %arg5[%c0_17, %c0_18] : memref<20x1xf32, #tpu.memory_space<vmem>>, vector<20x1xf32>
    %53 = vector.broadcast %52 : vector<20x1xf32> to vector<20x256xf32>
    %54 = arith.addf %51, %53 : vector<20x256xf32>
    %c0_19 = arith.constant 0 : index
    %c0_20 = arith.constant 0 : index
    %55 = vector.load %arg6[%c0_19, %c0_20] : memref<20x9xf32, #tpu.memory_space<vmem>>, vector<20x9xf32>
    %c1_i32_21 = arith.constant 1 : i32
    %56 = vector.broadcast %c1_i32_21 : i32 to vector<1x256xi32>
    %57 = arith.cmpi sge, %40, %56 : vector<1x256xi32>
    %58 = arith.extui %57 : vector<1x256xi1> to vector<1x256xi32>
    %59 = arith.sitofp %58 : vector<1x256xi32> to vector<1x256xf32>
    %c15_i32 = arith.constant 15 : i32
    %60 = vector.broadcast %c15_i32 : i32 to vector<1x256xi32>
    %61 = arith.cmpi slt, %40, %60 : vector<1x256xi32>
    %62 = arith.extui %61 : vector<1x256xi1> to vector<1x256xi32>
    %63 = arith.sitofp %62 : vector<1x256xi32> to vector<1x256xf32>
    %cst_22 = arith.constant 0.000000e+00 : f32
    %64 = vector.broadcast %cst_22 : f32 to vector<20x17xf32>
    %65 = tpu.concatenate %64, %54, %64 in 1 : vector<20x17xf32>, vector<20x256xf32>, vector<20x17xf32> -> vector<20x290xf32>
    %cst_23 = arith.constant 0.000000e+00 : f32
    %66 = vector.broadcast %cst_23 : f32 to vector<20x256xf32>
    %67 = vector.extract_strided_slice %65 {offsets = [0, 0], sizes = [20, 256], strides = [1, 1]} : vector<20x290xf32> to vector<20x256xf32>
    %68 = vector.broadcast %59 : vector<1x256xf32> to vector<20x256xf32>
    %69 = arith.mulf %67, %68 : vector<20x256xf32>
    %70 = vector.extract_strided_slice %55 {offsets = [0, 0], sizes = [20, 1], strides = [1, 1]} : vector<20x9xf32> to vector<20x1xf32>
    %71 = vector.broadcast %70 : vector<20x1xf32> to vector<20x256xf32>
    %72 = arith.mulf %69, %71 : vector<20x256xf32>
    %73 = arith.addf %66, %72 : vector<20x256xf32>
    %74 = vector.extract_strided_slice %65 {offsets = [0, 1], sizes = [20, 256], strides = [1, 1]} : vector<20x290xf32> to vector<20x256xf32>
    %75 = vector.extract_strided_slice %55 {offsets = [0, 1], sizes = [20, 1], strides = [1, 1]} : vector<20x9xf32> to vector<20x1xf32>
    %76 = vector.broadcast %75 : vector<20x1xf32> to vector<20x256xf32>
    %77 = arith.mulf %74, %76 : vector<20x256xf32>
    %78 = arith.addf %73, %77 : vector<20x256xf32>
    %79 = vector.extract_strided_slice %65 {offsets = [0, 2], sizes = [20, 256], strides = [1, 1]} : vector<20x290xf32> to vector<20x256xf32>
    %80 = vector.broadcast %63 : vector<1x256xf32> to vector<20x256xf32>
    %81 = arith.mulf %79, %80 : vector<20x256xf32>
    %82 = vector.extract_strided_slice %55 {offsets = [0, 2], sizes = [20, 1], strides = [1, 1]} : vector<20x9xf32> to vector<20x1xf32>
    %83 = vector.broadcast %82 : vector<20x1xf32> to vector<20x256xf32>
    %84 = arith.mulf %81, %83 : vector<20x256xf32>
    %85 = arith.addf %78, %84 : vector<20x256xf32>
    %86 = vector.extract_strided_slice %65 {offsets = [0, 16], sizes = [20, 256], strides = [1, 1]} : vector<20x290xf32> to vector<20x256xf32>
    %87 = vector.broadcast %59 : vector<1x256xf32> to vector<20x256xf32>
    %88 = arith.mulf %86, %87 : vector<20x256xf32>
    %89 = vector.extract_strided_slice %55 {offsets = [0, 3], sizes = [20, 1], strides = [1, 1]} : vector<20x9xf32> to vector<20x1xf32>
    %90 = vector.broadcast %89 : vector<20x1xf32> to vector<20x256xf32>
    %91 = arith.mulf %88, %90 : vector<20x256xf32>
    %92 = arith.addf %85, %91 : vector<20x256xf32>
    %93 = vector.extract_strided_slice %65 {offsets = [0, 17], sizes = [20, 256], strides = [1, 1]} : vector<20x290xf32> to vector<20x256xf32>
    %94 = vector.extract_strided_slice %55 {offsets = [0, 4], sizes = [20, 1], strides = [1, 1]} : vector<20x9xf32> to vector<20x1xf32>
    %95 = vector.broadcast %94 : vector<20x1xf32> to vector<20x256xf32>
    %96 = arith.mulf %93, %95 : vector<20x256xf32>
    %97 = arith.addf %92, %96 : vector<20x256xf32>
    %98 = vector.extract_strided_slice %65 {offsets = [0, 18], sizes = [20, 256], strides = [1, 1]} : vector<20x290xf32> to vector<20x256xf32>
    %99 = vector.broadcast %63 : vector<1x256xf32> to vector<20x256xf32>
    %100 = arith.mulf %98, %99 : vector<20x256xf32>
    %101 = vector.extract_strided_slice %55 {offsets = [0, 5], sizes = [20, 1], strides = [1, 1]} : vector<20x9xf32> to vector<20x1xf32>
    %102 = vector.broadcast %101 : vector<20x1xf32> to vector<20x256xf32>
    %103 = arith.mulf %100, %102 : vector<20x256xf32>
    %104 = arith.addf %97, %103 : vector<20x256xf32>
    %105 = vector.extract_strided_slice %65 {offsets = [0, 32], sizes = [20, 256], strides = [1, 1]} : vector<20x290xf32> to vector<20x256xf32>
    %106 = vector.broadcast %59 : vector<1x256xf32> to vector<20x256xf32>
    %107 = arith.mulf %105, %106 : vector<20x256xf32>
    %108 = vector.extract_strided_slice %55 {offsets = [0, 6], sizes = [20, 1], strides = [1, 1]} : vector<20x9xf32> to vector<20x1xf32>
    %109 = vector.broadcast %108 : vector<20x1xf32> to vector<20x256xf32>
    %110 = arith.mulf %107, %109 : vector<20x256xf32>
    %111 = arith.addf %104, %110 : vector<20x256xf32>
    %112 = vector.extract_strided_slice %65 {offsets = [0, 33], sizes = [20, 256], strides = [1, 1]} : vector<20x290xf32> to vector<20x256xf32>
    %113 = vector.extract_strided_slice %55 {offsets = [0, 7], sizes = [20, 1], strides = [1, 1]} : vector<20x9xf32> to vector<20x1xf32>
    %114 = vector.broadcast %113 : vector<20x1xf32> to vector<20x256xf32>
    %115 = arith.mulf %112, %114 : vector<20x256xf32>
    %116 = arith.addf %111, %115 : vector<20x256xf32>
    %117 = vector.extract_strided_slice %65 {offsets = [0, 34], sizes = [20, 256], strides = [1, 1]} : vector<20x290xf32> to vector<20x256xf32>
    %118 = vector.broadcast %63 : vector<1x256xf32> to vector<20x256xf32>
    %119 = arith.mulf %117, %118 : vector<20x256xf32>
    %120 = vector.extract_strided_slice %55 {offsets = [0, 8], sizes = [20, 1], strides = [1, 1]} : vector<20x9xf32> to vector<20x1xf32>
    %121 = vector.broadcast %120 : vector<20x1xf32> to vector<20x256xf32>
    %122 = arith.mulf %119, %121 : vector<20x256xf32>
    %123 = arith.addf %116, %122 : vector<20x256xf32>
    %c0_24 = arith.constant 0 : index
    %c0_25 = arith.constant 0 : index
    %124 = vector.load %arg7[%c0_24, %c0_25] : memref<20x1xf32, #tpu.memory_space<vmem>>, vector<20x1xf32>
    %125 = vector.broadcast %124 : vector<20x1xf32> to vector<20x256xf32>
    %126 = arith.addf %123, %125 : vector<20x256xf32>
    %127 = math.absf %126 : vector<20x256xf32>
    %cst_26 = arith.constant 0.000000e+00 : f32
    %128 = vector.broadcast %cst_26 : f32 to vector<20x256xf32>
    %129 = arith.subf %128, %127 : vector<20x256xf32>
    %130 = math.exp %129 : vector<20x256xf32>
    %131 = arith.mulf %130, %130 : vector<20x256xf32>
    %cst_27 = arith.constant 0.000000e+00 : f32
    %132 = vector.broadcast %cst_27 : f32 to vector<20x256xf32>
    %133 = arith.cmpf oge, %126, %132 : vector<20x256xf32>
    %cst_28 = arith.constant 2.000000e+00 : f32
    %134 = vector.broadcast %cst_28 : f32 to vector<20x256xf32>
    %135 = arith.mulf %134, %130 : vector<20x256xf32>
    %cst_29 = arith.constant 1.000000e+00 : f32
    %136 = vector.broadcast %cst_29 : f32 to vector<20x256xf32>
    %137 = arith.addf %136, %135 : vector<20x256xf32>
    %cst_30 = arith.constant 2.000000e+00 : f32
    %138 = vector.broadcast %cst_30 : f32 to vector<20x256xf32>
    %139 = arith.mulf %138, %130 : vector<20x256xf32>
    %140 = arith.addf %131, %139 : vector<20x256xf32>
    %141 = arith.select %133, %137, %140 : vector<20x256xi1>, vector<20x256xf32>
    %cst_31 = arith.constant 2.000000e+00 : f32
    %142 = vector.broadcast %cst_31 : f32 to vector<20x256xf32>
    %143 = arith.mulf %142, %131 : vector<20x256xf32>
    %cst_32 = arith.constant 2.000000e+00 : f32
    %144 = vector.broadcast %cst_32 : f32 to vector<20x256xf32>
    %145 = arith.select %133, %143, %144 : vector<20x256xi1>, vector<20x256xf32>
    %146 = arith.addf %141, %145 : vector<20x256xf32>
    %147 = arith.mulf %126, %141 : vector<20x256xf32>
    %148 = tpu.reciprocal %146 {approx = true} : vector<20x256xf32> -> vector<20x256xf32>
    %149 = arith.mulf %147, %148 : vector<20x256xf32>
    %cst_33 = arith.constant 0.000000e+00 : f32
    %150 = vector.broadcast %cst_33 : f32 to vector<20x2xf32>
    %151 = tpu.concatenate %150, %149, %150 in 1 : vector<20x2xf32>, vector<20x256xf32>, vector<20x2xf32> -> vector<20x260xf32>
    %152 = vector.extract_strided_slice %151 {offsets = [0, 4], sizes = [4, 256], strides = [1, 1]} : vector<20x260xf32> to vector<4x256xf32>
    %c14_i32 = arith.constant 14 : i32
    %153 = vector.broadcast %c14_i32 : i32 to vector<1x256xi32>
    %154 = arith.cmpi slt, %40, %153 : vector<1x256xi32>
    %cst_34 = arith.constant 0.000000e+00 : f32
    %155 = vector.shape_cast %154 : vector<1x256xi1> to vector<1x256xi1>
    %156 = vector.broadcast %155 : vector<1x256xi1> to vector<4x256xi1>
    %157 = vector.broadcast %cst_34 : f32 to vector<4x256xf32>
    %158 = arith.select %156, %152, %157 : vector<4x256xi1>, vector<4x256xf32>
    %159 = vector.extract_strided_slice %151 {offsets = [4, 3], sizes = [4, 256], strides = [1, 1]} : vector<20x260xf32> to vector<4x256xf32>
    %c15_i32_35 = arith.constant 15 : i32
    %160 = vector.broadcast %c15_i32_35 : i32 to vector<1x256xi32>
    %161 = arith.cmpi slt, %40, %160 : vector<1x256xi32>
    %cst_36 = arith.constant 0.000000e+00 : f32
    %162 = vector.shape_cast %161 : vector<1x256xi1> to vector<1x256xi1>
    %163 = vector.broadcast %162 : vector<1x256xi1> to vector<4x256xi1>
    %164 = vector.broadcast %cst_36 : f32 to vector<4x256xf32>
    %165 = arith.select %163, %159, %164 : vector<4x256xi1>, vector<4x256xf32>
    %166 = vector.extract_strided_slice %151 {offsets = [8, 2], sizes = [4, 256], strides = [1, 1]} : vector<20x260xf32> to vector<4x256xf32>
    %167 = vector.extract_strided_slice %151 {offsets = [12, 1], sizes = [4, 256], strides = [1, 1]} : vector<20x260xf32> to vector<4x256xf32>
    %c1_i32_37 = arith.constant 1 : i32
    %168 = vector.broadcast %c1_i32_37 : i32 to vector<1x256xi32>
    %169 = arith.cmpi sge, %40, %168 : vector<1x256xi32>
    %cst_38 = arith.constant 0.000000e+00 : f32
    %170 = vector.shape_cast %169 : vector<1x256xi1> to vector<1x256xi1>
    %171 = vector.broadcast %170 : vector<1x256xi1> to vector<4x256xi1>
    %172 = vector.broadcast %cst_38 : f32 to vector<4x256xf32>
    %173 = arith.select %171, %167, %172 : vector<4x256xi1>, vector<4x256xf32>
    %174 = vector.extract_strided_slice %151 {offsets = [16, 0], sizes = [4, 256], strides = [1, 1]} : vector<20x260xf32> to vector<4x256xf32>
    %c2_i32 = arith.constant 2 : i32
    %175 = vector.broadcast %c2_i32 : i32 to vector<1x256xi32>
    %176 = arith.cmpi sge, %40, %175 : vector<1x256xi32>
    %cst_39 = arith.constant 0.000000e+00 : f32
    %177 = vector.shape_cast %176 : vector<1x256xi1> to vector<1x256xi1>
    %178 = vector.broadcast %177 : vector<1x256xi1> to vector<4x256xi1>
    %179 = vector.broadcast %cst_39 : f32 to vector<4x256xf32>
    %180 = arith.select %178, %174, %179 : vector<4x256xi1>, vector<4x256xf32>
    %181 = tpu.concatenate %158, %165, %166, %173, %180 in 0 : vector<4x256xf32>, vector<4x256xf32>, vector<4x256xf32>, vector<4x256xf32>, vector<4x256xf32> -> vector<20x256xf32>
    %c0_40 = arith.constant 0 : index
    %c0_41 = arith.constant 0 : index
    %182 = vector.load %arg8[%c0_40, %c0_41] : memref<20x20xbf16, #tpu.memory_space<vmem>>, vector<20x20xbf16>
    %183 = arith.truncf %181 : vector<20x256xf32> to vector<20x256xbf16>
    %cst_42 = arith.constant dense<0.000000e+00> : vector<20x256xf32>
    %184 = tpu.matmul %182, %183, %cst_42 {dimension_numbers = #tpu.dot_dimension_numbers<[1], [0], [0], [1], [0, 0, 1, 1], [], []>} : vector<20x20xbf16>, vector<20x256xbf16>, vector<20x256xf32> -> vector<20x256xf32>
    %c0_43 = arith.constant 0 : index
    %c0_44 = arith.constant 0 : index
    %185 = vector.load %arg9[%c0_43, %c0_44] : memref<20x1xf32, #tpu.memory_space<vmem>>, vector<20x1xf32>
    %186 = vector.broadcast %185 : vector<20x1xf32> to vector<20x256xf32>
    %187 = arith.addf %184, %186 : vector<20x256xf32>
    %188 = arith.addf %1, %187 : vector<20x256xf32>
    %c0_45 = arith.constant 0 : index
    %c0_46 = arith.constant 0 : index
    %c0_47 = arith.constant 0 : index
    %189 = vector.load %arg10[%c0_45, %c0_46, %c0_47] : memref<1x20x256xf32, #tpu.memory_space<vmem>>, vector<1x20x256xf32>
    %190 = vector.shape_cast %189 : vector<1x20x256xf32> to vector<20x256xf32>
    %191 = vector.shape_cast %188 : vector<20x256xf32> to vector<1x20x256xf32>
    tpu.vector_store %arg10[%c0_45, %c0_46, %c0_47], %191 {strides = array<i32>} : memref<1x20x256xf32, #tpu.memory_space<vmem>>, vector<1x20x256xf32>,
    return
  }
  func.func @transform_0(%arg0: i32) -> (i32, i32, i32) {
    %c0_i32 = arith.constant 0 : i32
    %c0_i32_0 = arith.constant 0 : i32
    %c0_i32_1 = arith.constant 0 : i32
    return %arg0, %c0_i32, %c0_i32_0 : i32, i32, i32
  }
  func.func @transform_1(%arg0: i32) -> (i32, i32) {
    %c0_i32 = arith.constant 0 : i32
    %c0_i32_0 = arith.constant 0 : i32
    %c0_i32_1 = arith.constant 0 : i32
    return %c0_i32, %c0_i32_0 : i32, i32
  }
  func.func @transform_2(%arg0: i32) -> (i32, i32) {
    %c0_i32 = arith.constant 0 : i32
    %c0_i32_0 = arith.constant 0 : i32
    %c0_i32_1 = arith.constant 0 : i32
    return %c0_i32, %c0_i32_0 : i32, i32
  }
  func.func @transform_3(%arg0: i32) -> (i32, i32) {
    %c0_i32 = arith.constant 0 : i32
    %c0_i32_0 = arith.constant 0 : i32
    %c0_i32_1 = arith.constant 0 : i32
    return %c0_i32, %c0_i32_0 : i32, i32
  }
  func.func @transform_4(%arg0: i32) -> (i32, i32) {
    %c0_i32 = arith.constant 0 : i32
    %c0_i32_0 = arith.constant 0 : i32
    %c0_i32_1 = arith.constant 0 : i32
    return %c0_i32, %c0_i32_0 : i32, i32
  }
  func.func @transform_5(%arg0: i32) -> (i32, i32) {
    %c0_i32 = arith.constant 0 : i32
    %c0_i32_0 = arith.constant 0 : i32
    %c0_i32_1 = arith.constant 0 : i32
    return %c0_i32, %c0_i32_0 : i32, i32
  }
  func.func @transform_6(%arg0: i32) -> (i32, i32) {
    %c0_i32 = arith.constant 0 : i32
    %c0_i32_0 = arith.constant 0 : i32
    %c0_i32_1 = arith.constant 0 : i32
    return %c0_i32, %c0_i32_0 : i32, i32
  }
  func.func @transform_7(%arg0: i32) -> (i32, i32) {
    %c0_i32 = arith.constant 0 : i32
    %c0_i32_0 = arith.constant 0 : i32
    %c0_i32_1 = arith.constant 0 : i32
    return %c0_i32, %c0_i32_0 : i32, i32
  }
  func.func @transform_8(%arg0: i32) -> (i32, i32) {
    %c0_i32 = arith.constant 0 : i32
    %c0_i32_0 = arith.constant 0 : i32
    %c0_i32_1 = arith.constant 0 : i32
    return %c0_i32, %c0_i32_0 : i32, i32
  }
  func.func @transform_9(%arg0: i32) -> (i32, i32, i32) {
    %c0_i32 = arith.constant 0 : i32
    %c0_i32_0 = arith.constant 0 : i32
    %c0_i32_1 = arith.constant 0 : i32
    return %arg0, %c0_i32, %c0_i32_0 : i32, i32, i32
  }
}

</mosaic_0001>

<llo_original>
// kernel: tpu_custom_call.1
$region0: #{tpu_custom_call.1}
  #allocation0 [shape = 'u32[]', space=smem, size = 0x4, offset = 0x4, fixed_abs, tag = 'smem constant byte address 0x4 - core index']
  #allocation1 [shape = 'u32[144,128]{1,0:T(1,128)}', space=vmem, size = 0x12000, scoped, tag = 'internal scratch']
  %s0 = inlined_call_operand.vmem [shape: f32[2,20,256], index: 0, kind: input, shape index: {}]
  %s1 = inlined_call_operand.vmem [shape: f32[20,1], index: 1, kind: input, shape index: {}]
  %s2 = inlined_call_operand.vmem [shape: f32[20,1], index: 2, kind: input, shape index: {}]
  %s3 = inlined_call_operand.vmem [shape: bf16[20,20], index: 3, kind: input, shape index: {}]
  %s4 = inlined_call_operand.vmem [shape: f32[20,1], index: 4, kind: input, shape index: {}]
  %s5 = inlined_call_operand.vmem [shape: f32[20,9], index: 5, kind: input, shape index: {}]
  %s6 = inlined_call_operand.vmem [shape: f32[20,1], index: 6, kind: input, shape index: {}]
  %s7 = inlined_call_operand.vmem [shape: bf16[20,20], index: 7, kind: input, shape index: {}]
  %s8 = inlined_call_operand.vmem [shape: f32[20,1], index: 8, kind: input, shape index: {}]
  %s9 = inlined_call_operand.vmem [shape: f32[2,20,256], index: 9, kind: output, shape index: {}]
  %s10 = sld [smem:[#allocation0]]
  $region69: #{tpu_custom_call.1} parent=0
    _
  %s12 = ssub.s32 1, %s10
  %s13 = scalar_select 0, %s12, %s10
  loop: start=0, step=1, limit=4
  $region2: #{tpu_custom_call.1} parent=0 // loop_pre_header
    _
  $region3: #{tpu_custom_call.1} parent=0 // loop_header
    %s15 = sphi 0, %s19
    %p16 = scmp.ge.s32.totalorder %s15, 4
    %s25 = sphi 0, %s27
    %s28 = sphi 0, %s25
    %s29 = sphi 0, %s28
    %s45 = sphi 0, %s29
    %s49 = sphi 0, %s49
    %s51 = sphi 0, %s49
    %s52 = sphi 0, %s51
    %s66 = sphi 0, %s52
    %s70 = sphi 0, %s70
    %s72 = sphi 0, %s70
    %s73 = sphi 0, %s72
    %s87 = sphi 0, %s73
    %s91 = sphi 0, %s91
    %s93 = sphi 0, %s91
    %s94 = sphi 0, %s93
    %s108 = sphi 0, %s94
    %s112 = sphi 0, %s112
    %s114 = sphi 0, %s112
    %s115 = sphi 0, %s114
    %s129 = sphi 0, %s115
    %s133 = sphi 0, %s133
    %s135 = sphi 0, %s133
    %s136 = sphi 0, %s135
    %s150 = sphi 0, %s136
    %s154 = sphi 0, %s154
    %s156 = sphi 0, %s154
    %s157 = sphi 0, %s156
    %s171 = sphi 0, %s157
    %s175 = sphi 0, %s175
    %s177 = sphi 0, %s175
    %s178 = sphi 0, %s177
    %s192 = sphi 0, %s178
    %s196 = sphi 0, %s196
    %s198 = sphi 0, %s196
    %s199 = sphi 0, %s198
    %s213 = sphi 0, %s199
    %s219 = sphi 0, %s221
    %s222 = sphi 0, %s219
    %s223 = sphi 0, %s222
    %s239 = sphi 0, %s223
  $region4: #{tpu_custom_call.1} parent=0 // loop_header_branch
    %18 = sbr.rel (%p16) target = $region8
  $region5: #{tpu_custom_call.1} parent=0 // loop_body
    %s20 = ssub.s32 %s15, 1
    %s21 = ssub.s32 %s15, 2
    %s22 = sadd.s32 %s15, 1
    %s23 = ssub.s32 %s15, %s22
    %p24 = scmp.eq.s32.totalorder %s23, 0
    %s26 = sadd.s32 %s25, 1
    %s27 = scalar_select %p24, %s25, %s26
    %p30 = pneg %p24
    %p31 = scmp.eq.s32.totalorder %s15, 1
    %p32 = por %p30, %p31
    %p33 = scmp.ne.s32.totalorder %s25, %s28
    %p34 = scmp.eq.s32.totalorder %s15, 0
    %p35 = por %p33, %p34
    %p36 = scmp.ne.s32.totalorder %s25, %s28
    %p37 = scmp.eq.s32.totalorder %s20, 1
    %p38 = por %p36, %p37
    %p39 = scmp.ne.s32.totalorder %s28, %s29
    %p40 = scmp.eq.s32.totalorder %s20, 0
    %p41 = por %p39, %p40
    %p42 = scmp.ne.s32.totalorder %s28, %s29
    %p43 = scmp.eq.s32.totalorder %s21, 1
    %p44 = por %p42, %p43
    %p46 = scmp.ne.s32.totalorder %s29, %s45
    %p47 = scmp.eq.s32.totalorder %s21, 0
    %p48 = por %p46, %p47
    %s50 = sadd.s32 %s49, 1
    %p53 = scmp.eq.s32.totalorder %s15, 1
    %p54 = scmp.ne.s32.totalorder %s49, %s51
    %p55 = scmp.eq.s32.totalorder %s15, 0
    %p56 = por %p54, %p55
    %p57 = scmp.ne.s32.totalorder %s49, %s51
    %p58 = scmp.eq.s32.totalorder %s20, 1
    %p59 = por %p57, %p58
    %p60 = scmp.ne.s32.totalorder %s51, %s52
    %p61 = scmp.eq.s32.totalorder %s20, 0
    %p62 = por %p60, %p61
    %p63 = scmp.ne.s32.totalorder %s51, %s52
    %p64 = scmp.eq.s32.totalorder %s21, 1
    %p65 = por %p63, %p64
    %p67 = scmp.ne.s32.totalorder %s52, %s66
    %p68 = scmp.eq.s32.totalorder %s21, 0
    %p69 = por %p67, %p68
    %s71 = sadd.s32 %s70, 1
    %p74 = scmp.eq.s32.totalorder %s15, 1
    %p75 = scmp.ne.s32.totalorder %s70, %s72
    %p76 = scmp.eq.s32.totalorder %s15, 0
    %p77 = por %p75, %p76
    %p78 = scmp.ne.s32.totalorder %s70, %s72
    %p79 = scmp.eq.s32.totalorder %s20, 1
    %p80 = por %p78, %p79
    %p81 = scmp.ne.s32.totalorder %s72, %s73
    %p82 = scmp.eq.s32.totalorder %s20, 0
    %p83 = por %p81, %p82
    %p84 = scmp.ne.s32.totalorder %s72, %s73
    %p85 = scmp.eq.s32.totalorder %s21, 1
    %p86 = por %p84, %p85
    %p88 = scmp.ne.s32.totalorder %s73, %s87
    %p89 = scmp.eq.s32.totalorder %s21, 0
    %p90 = por %p88, %p89
    %s92 = sadd.s32 %s91, 1
    %p95 = scmp.eq.s32.totalorder %s15, 1
    %p96 = scmp.ne.s32.totalorder %s91, %s93
    %p97 = scmp.eq.s32.totalorder %s15, 0
    %p98 = por %p96, %p97
    %p99 = scmp.ne.s32.totalorder %s91, %s93
    %p100 = scmp.eq.s32.totalorder %s20, 1
    %p101 = por %p99, %p100
    %p102 = scmp.ne.s32.totalorder %s93, %s94
    %p103 = scmp.eq.s32.totalorder %s20, 0
    %p104 = por %p102, %p103
    %p105 = scmp.ne.s32.totalorder %s93, %s94
    %p106 = scmp.eq.s32.totalorder %s21, 1
    %p107 = por %p105, %p106
    %p109 = scmp.ne.s32.totalorder %s94, %s108
    %p110 = scmp.eq.s32.totalorder %s21, 0
    %p111 = por %p109, %p110
    %s113 = sadd.s32 %s112, 1
    %p116 = scmp.eq.s32.totalorder %s15, 1
    %p117 = scmp.ne.s32.totalorder %s112, %s114
    %p118 = scmp.eq.s32.totalorder %s15, 0
    %p119 = por %p117, %p118
    %p120 = scmp.ne.s32.totalorder %s112, %s114
    %p121 = scmp.eq.s32.totalorder %s20, 1
    %p122 = por %p120, %p121
    %p123 = scmp.ne.s32.totalorder %s114, %s115
    %p124 = scmp.eq.s32.totalorder %s20, 0
    %p125 = por %p123, %p124
    %p126 = scmp.ne.s32.totalorder %s114, %s115
    %p127 = scmp.eq.s32.totalorder %s21, 1
    %p128 = por %p126, %p127
    %p130 = scmp.ne.s32.totalorder %s115, %s129
    %p131 = scmp.eq.s32.totalorder %s21, 0
    %p132 = por %p130, %p131
    %s134 = sadd.s32 %s133, 1
    %p137 = scmp.eq.s32.totalorder %s15, 1
    %p138 = scmp.ne.s32.totalorder %s133, %s135
    %p139 = scmp.eq.s32.totalorder %s15, 0
    %p140 = por %p138, %p139
    %p141 = scmp.ne.s32.totalorder %s133, %s135
    %p142 = scmp.eq.s32.totalorder %s20, 1
    %p143 = por %p141, %p142
    %p144 = scmp.ne.s32.totalorder %s135, %s136
    %p145 = scmp.eq.s32.totalorder %s20, 0
    %p146 = por %p144, %p145
    %p147 = scmp.ne.s32.totalorder %s135, %s136
    %p148 = scmp.eq.s32.totalorder %s21, 1
    %p149 = por %p147, %p148
    %p151 = scmp.ne.s32.totalorder %s136, %s150
    %p152 = scmp.eq.s32.totalorder %s21, 0
    %p153 = por %p151, %p152
    %s155 = sadd.s32 %s154, 1
    %p158 = scmp.eq.s32.totalorder %s15, 1
    %p159 = scmp.ne.s32.totalorder %s154, %s156
    %p160 = scmp.eq.s32.totalorder %s15, 0
    %p161 = por %p159, %p160
    %p162 = scmp.ne.s32.totalorder %s154, %s156
    %p163 = scmp.eq.s32.totalorder %s20, 1
    %p164 = por %p162, %p163
    %p165 = scmp.ne.s32.totalorder %s156, %s157
    %p166 = scmp.eq.s32.totalorder %s20, 0
    %p167 = por %p165, %p166
    %p168 = scmp.ne.s32.totalorder %s156, %s157
    %p169 = scmp.eq.s32.totalorder %s21, 1
    %p170 = por %p168, %p169
    %p172 = scmp.ne.s32.totalorder %s157, %s171
    %p173 = scmp.eq.s32.totalorder %s21, 0
    %p174 = por %p172, %p173
    %s176 = sadd.s32 %s175, 1
    %p179 = scmp.eq.s32.totalorder %s15, 1
    %p180 = scmp.ne.s32.totalorder %s175, %s177
    %p181 = scmp.eq.s32.totalorder %s15, 0
    %p182 = por %p180, %p181
    %p183 = scmp.ne.s32.totalorder %s175, %s177
    %p184 = scmp.eq.s32.totalorder %s20, 1
    %p185 = por %p183, %p184
    %p186 = scmp.ne.s32.totalorder %s177, %s178
    %p187 = scmp.eq.s32.totalorder %s20, 0
    %p188 = por %p186, %p187
    %p189 = scmp.ne.s32.totalorder %s177, %s178
    %p190 = scmp.eq.s32.totalorder %s21, 1
    %p191 = por %p189, %p190
    %p193 = scmp.ne.s32.totalorder %s178, %s192
    %p194 = scmp.eq.s32.totalorder %s21, 0
    %p195 = por %p193, %p194
    %s197 = sadd.s32 %s196, 1
    %p200 = scmp.eq.s32.totalorder %s15, 1
    %p201 = scmp.ne.s32.totalorder %s196, %s198
    %p202 = scmp.eq.s32.totalorder %s15, 0
    %p203 = por %p201, %p202
    %p204 = scmp.ne.s32.totalorder %s196, %s198
    %p205 = scmp.eq.s32.totalorder %s20, 1
    %p206 = por %p204, %p205
    %p207 = scmp.ne.s32.totalorder %s198, %s199
    %p208 = scmp.eq.s32.totalorder %s20, 0
    %p209 = por %p207, %p208
    %p210 = scmp.ne.s32.totalorder %s198, %s199
    %p211 = scmp.eq.s32.totalorder %s21, 1
    %p212 = por %p210, %p211
    %p214 = scmp.ne.s32.totalorder %s199, %s213
    %p215 = scmp.eq.s32.totalorder %s21, 0
    %p216 = por %p214, %p215
    %s217 = ssub.s32 %s15, %s22
    %p218 = scmp.eq.s32.totalorder %s217, 0
    %s220 = sadd.s32 %s219, 1
    %s221 = scalar_select %p218, %s219, %s220
    %p224 = pneg %p218
    %p225 = scmp.eq.s32.totalorder %s15, 1
    %p226 = por %p224, %p225
    %p227 = scmp.ne.s32.totalorder %s219, %s222
    %p228 = scmp.eq.s32.totalorder %s15, 0
    %p229 = por %p227, %p228
    %p230 = scmp.ne.s32.totalorder %s219, %s222
    %p231 = scmp.eq.s32.totalorder %s20, 1
    %p232 = por %p230, %p231
    %p233 = scmp.ne.s32.totalorder %s222, %s223
    %p234 = scmp.eq.s32.totalorder %s20, 0
    %p235 = por %p233, %p234
    %p236 = scmp.ne.s32.totalorder %s222, %s223
    %p237 = scmp.eq.s32.totalorder %s21, 1
    %p238 = por %p236, %p237
    %p240 = scmp.ne.s32.totalorder %s223, %s239
    %p241 = scmp.eq.s32.totalorder %s21, 0
    %p242 = por %p240, %p241
    %p243 = scmp.le.s32.totalorder 1, %s15
    %p244 = scmp.lt.s32.totalorder %s15, 3
    %p245 = pnand %p243, %p244
    %p246 = pneg %p245
    // Predicated region
    $region9: #{tpu_custom_call.1} parent=5 // pred_check
      _
    $region10: #{tpu_custom_call.1} parent=5 // pred_check_branch
      %248 = sbr.rel (%p245) target = $region12
    $region11: #{tpu_custom_call.1} parent=5 // pred_region
      %s249 = ssub.s32 %s15, 1
      // Predicated region
      $region13: #{tpu_custom_call.1} parent=11 // pred_check
        %p250 = pneg %p62
      $region14: #{tpu_custom_call.1} parent=11 // pred_check_branch
        %252 = sbr.rel (%p250) target = $region16
      $region15: #{tpu_custom_call.1} parent=11 // pred_region
        _
      $region16: #{tpu_custom_call.1} parent=11 // pred_fallthru
        _
      // Predicated region
      $region17: #{tpu_custom_call.1} parent=11 // pred_check
        %p253 = pneg %p83
      $region18: #{tpu_custom_call.1} parent=11 // pred_check_branch
        %255 = sbr.rel (%p253) target = $region20
      $region19: #{tpu_custom_call.1} parent=11 // pred_region
        _
      $region20: #{tpu_custom_call.1} parent=11 // pred_fallthru
        _
      // Predicated region
      $region21: #{tpu_custom_call.1} parent=11 // pred_check
        %p256 = pneg %p104
      $region22: #{tpu_custom_call.1} parent=11 // pred_check_branch
        %258 = sbr.rel (%p256) target = $region24
      $region23: #{tpu_custom_call.1} parent=11 // pred_region
        _
      $region24: #{tpu_custom_call.1} parent=11 // pred_fallthru
        _
      // Predicated region
      $region25: #{tpu_custom_call.1} parent=11 // pred_check
        %p259 = pneg %p125
      $region26: #{tpu_custom_call.1} parent=11 // pred_check_branch
        %261 = sbr.rel (%p259) target = $region28
      $region27: #{tpu_custom_call.1} parent=11 // pred_region
        _
      $region28: #{tpu_custom_call.1} parent=11 // pred_fallthru
        _
      // Predicated region
      $region29: #{tpu_custom_call.1} parent=11 // pred_check
        %p262 = pneg %p146
      $region30: #{tpu_custom_call.1} parent=11 // pred_check_branch
        %264 = sbr.rel (%p262) target = $region32
      $region31: #{tpu_custom_call.1} parent=11 // pred_region
        _
      $region32: #{tpu_custom_call.1} parent=11 // pred_fallthru
        _
      // Predicated region
      $region33: #{tpu_custom_call.1} parent=11 // pred_check
        %p265 = pneg %p167
      $region34: #{tpu_custom_call.1} parent=11 // pred_check_branch
        %267 = sbr.rel (%p265) target = $region36
      $region35: #{tpu_custom_call.1} parent=11 // pred_region
        _
      $region36: #{tpu_custom_call.1} parent=11 // pred_fallthru
        _
      // Predicated region
      $region37: #{tpu_custom_call.1} parent=11 // pred_check
        %p268 = pneg %p188
      $region38: #{tpu_custom_call.1} parent=11 // pred_check_branch
        %270 = sbr.rel (%p268) target = $region40
      $region39: #{tpu_custom_call.1} parent=11 // pred_region
        _
      $region40: #{tpu_custom_call.1} parent=11 // pred_fallthru
        _
      // Predicated region
      $region41: #{tpu_custom_call.1} parent=11 // pred_check
        %p271 = pneg %p209
      $region42: #{tpu_custom_call.1} parent=11 // pred_check_branch
        %273 = sbr.rel (%p271) target = $region44
      $region43: #{tpu_custom_call.1} parent=11 // pred_region
        _
      $region44: #{tpu_custom_call.1} parent=11 // pred_fallthru
        _
    $region12: #{tpu_custom_call.1} parent=5 // pred_fallthru
      _
    %p274 = scmp.lt.s32.totalorder %s15, 2
    // Predicated region
    $region45: #{tpu_custom_call.1} parent=5 // pred_check
      %p275 = pneg %p274
    $region46: #{tpu_custom_call.1} parent=5 // pred_check_branch
      %277 = sbr.rel (%p275) target = $region48
    $region47: #{tpu_custom_call.1} parent=5 // pred_region
      // Predicated region
      $region49: #{tpu_custom_call.1} parent=47 // pred_check
        %p278 = pneg %p35
      $region50: #{tpu_custom_call.1} parent=47 // pred_check_branch
        %280 = sbr.rel (%p278) target = $region52
      $region51: #{tpu_custom_call.1} parent=47 // pred_region
        %p281 = scmp.lt.s32.totalorder %s15, 1
        %s282 = scalar_select %p281, %s15, 1
        %s283 = smul.addr %s282, 6
        %s284 = smul.addr %s283, 8
        %s285 = scalar_lea.vmem %s0, %s284
      $region52: #{tpu_custom_call.1} parent=47 // pred_fallthru
        _
    $region48: #{tpu_custom_call.1} parent=5 // pred_fallthru
      _
    %p286 = scmp.le.s32.totalorder 1, %s15
    %p287 = scmp.lt.s32.totalorder %s15, 3
    %p288 = pnand %p286, %p287
    %p289 = pneg %p288
    // Predicated region
    $region53: #{tpu_custom_call.1} parent=5 // pred_check
      _
    $region54: #{tpu_custom_call.1} parent=5 // pred_check_branch
      %291 = sbr.rel (%p288) target = $region56
    $region55: #{tpu_custom_call.1} parent=5 // pred_region
      %s292 = ssub.s32 %s15, 1
      %p293 = scmp.lt.s32.totalorder %s20, 1
      %s294 = scalar_select %p293, %s20, 1
      %s295 = smul.addr %s294, 6
      %s296 = smul.addr %s295, 8
      %s297 = scalar_lea.vmem %s0, %s296
      %p298 = pneg %p41
      %p299 = pneg %p38
      %p300 = pneg %p62
      %p301 = pneg %p59
      %p302 = pneg %p83
      %p303 = pneg %p80
      %p304 = pneg %p104
      %p305 = pneg %p101
      %p306 = pneg %p125
      %p307 = pneg %p122
      %p308 = pneg %p146
      %p309 = pneg %p143
      %p310 = pneg %p167
      %p311 = pneg %p164
      %p312 = pneg %p188
      %p313 = pneg %p185
      %p314 = pneg %p209
      %p315 = pneg %p206
      %p316 = pneg %p235
      %p317 = pneg %p232
      %p318 = scmp.lt.s32.totalorder %s20, 1
      %s319 = scalar_select %p318, %s20, 1
      %s320 = smul.addr %s319, 6
      %s321 = smul.addr %s320, 8
      %s322 = scalar_lea.vmem %s9, %s321
      %p323 = scmp.lt.s32.totalorder %s20, 1
      %s324 = scalar_select %p323, %s20, 1
      %s325 = smul.addr %s324, 6
      %s326 = smul.addr %s325, 8
      %s327 = scalar_lea.vmem %s0, %s326
      %p328 = scmp.lt.s32.totalorder %s20, 1
      %s329 = scalar_select %p328, %s20, 1
      %s330 = smul.addr %s329, 6
      %s331 = smul.addr %s330, 8
      %s332 = scalar_lea.vmem %s9, %s331
      %v334 = vld [vmem:[%s327] sm:$0xff]
      %v335 = vld [vmem:[%s327 + $0x8] sm:$0xff]
      %v336 = vld [vmem:[%s327 + $0x10] sm:$0xff]
      %v337 = vld [vmem:[%s327 + $0x18] sm:$0xff]
      %v338 = vld [vmem:[%s327 + $0x20] sm:$0xf]
      %v339 = vld [vmem:[%s327 + $0x28] sm:$0xf]
      %v340 = vadd.f32 %v334, %v336
      %vm341 = vcmask 1043456
      %v342 = vsel %vm341, %v338, 0.0
      %v343 = vadd.f32 %v340, %v342
      %v344 = vrot.slane %v343, 4
      %v345 = vadd.f32 %v343, %v344
      %v346 = vrot.slane %v345, 2
      %v347 = vadd.f32 %v345, %v346
      %v348 = vrot.slane %v347, 1
      %v349 = vadd.f32 %v347, %v348
      %v350 = vadd.f32 %v335, %v337
      %v351 = vsel %vm341, %v339, 0.0
      %v352 = vadd.f32 %v350, %v351
      %v353 = vrot.slane %v352, 4
      %v354 = vadd.f32 %v352, %v353
      %v355 = vrot.slane %v354, 2
      %v356 = vadd.f32 %v354, %v355
      %v357 = vrot.slane %v356, 1
      %v358 = vadd.f32 %v356, %v357
      %v359 = vrcp.pop 20.0
      %v360 = vmul.f32 %v349, %v359
      %v361 = vmul.f32 %v358, %v359
      %v362 = vsub.f32 %v334, %v360
      %v363 = vsub.f32 %v335, %v361
      %v364 = vsub.f32 %v336, %v360
      %v365 = vsub.f32 %v337, %v361
      %v366 = vsub.f32 %v338, %v360
      %v367 = vsub.f32 %v339, %v361
      %v368 = vmul.f32 %v362, %v362
      %v369 = vmul.f32 %v363, %v363
      %v370 = vmul.f32 %v364, %v364
      %v371 = vmul.f32 %v365, %v365
      %v372 = vmul.f32 %v366, %v366
      %v373 = vmul.f32 %v367, %v367
      %v374 = vadd.f32 %v368, %v370
      %v375 = vsel %vm341, %v372, 0.0
      %v376 = vadd.f32 %v374, %v375
      %v377 = vrot.slane %v376, 4
      %v378 = vadd.f32 %v376, %v377
      %v379 = vrot.slane %v378, 2
      %v380 = vadd.f32 %v378, %v379
      %v381 = vrot.slane %v380, 1
      %v382 = vadd.f32 %v380, %v381
      %v383 = vadd.f32 %v369, %v371
      %v384 = vsel %vm341, %v373, 0.0
      %v385 = vadd.f32 %v383, %v384
      %v386 = vrot.slane %v385, 4
      %v387 = vadd.f32 %v385, %v386
      %v388 = vrot.slane %v387, 2
      %v389 = vadd.f32 %v387, %v388
      %v390 = vrot.slane %v389, 1
      %v391 = vadd.f32 %v389, %v390
      %v392 = vmul.f32 %v382, %v359
      %v393 = vmul.f32 %v391, %v359
      %v394 = vadd.f32 %v392, 1e-05
      %v395 = vadd.f32 %v393, 1e-05
      %v396 = vrsqrt.pop %v394
      %v397 = vrsqrt.pop %v395
      %v398 = vmul.f32 %v362, %v396
      %v399 = vmul.f32 %v363, %v397
      %v400 = vmul.f32 %v364, %v396
      %v401 = vmul.f32 %v365, %v397
      %v402 = vmul.f32 %v366, %v396
      %v403 = vmul.f32 %v367, %v397
      %v404 = vld [vmem:[%s1] sm:$0xff]
      %v405 = vld [vmem:[%s1 + $0x8] sm:$0xff]
      %v406 = vld [vmem:[%s1 + $0x10] sm:$0xf]
      %408 = vset.pattern.permute.xlu0 0
      %409 = vperm.xlu0 %408, %v404
      %v410 = vpop.permute.xlu0 %409
      %413 = vset.pattern.permute.xlu0 0
      %414 = vperm.xlu0 %413, %v405
      %v415 = vpop.permute.xlu0 %414
      %418 = vset.pattern.permute.xlu0 0
      %419 = vperm.xlu0 %418, %v406
      %v420 = vpop.permute.xlu0 %419
      %v422 = vmul.f32 %v398, %v410
      %v423 = vmul.f32 %v399, %v410
      %v424 = vmul.f32 %v400, %v415
      %v425 = vmul.f32 %v401, %v415
      %v426 = vmul.f32 %v402, %v420
      %v427 = vmul.f32 %v403, %v420
      %v428 = vld [vmem:[%s2] sm:$0xff]
      %v429 = vld [vmem:[%s2 + $0x8] sm:$0xff]
      %v430 = vld [vmem:[%s2 + $0x10] sm:$0xf]
      %432 = vset.pattern.permute.xlu0 0
      %433 = vperm.xlu0 %432, %v428
      %v434 = vpop.permute.xlu0 %433
      %437 = vset.pattern.permute.xlu0 0
      %438 = vperm.xlu0 %437, %v429
      %v439 = vpop.permute.xlu0 %438
      %442 = vset.pattern.permute.xlu0 0
      %443 = vperm.xlu0 %442, %v430
      %v444 = vpop.permute.xlu0 %443
      %v446 = vadd.f32 %v422, %v434
      %v447 = vadd.f32 %v423, %v434
      %v448 = vadd.f32 %v424, %v439
      %v449 = vadd.f32 %v425, %v439
      %v450 = vadd.f32 %v426, %v444
      %v451 = vadd.f32 %v427, %v444
      %v452 = vlaneseq
      %v453 = vand.u32 %v452, 127
      %v454 = vadd.s32 %v453, 128
      %vm455 = vcmp.lt.s32.totalorder %v453, 0
      %v456 = vsub.s32 0, %v453
      %v457 = vsel %vm455, %v456, %v453
      %v458 = vshrl.u32 %v457, 4
      %v459 = vand.u32 %v457, 15
      %v460 = vsub.s32 0, %v459
      %v461 = vsel %vm455, %v460, %v459
      %vm462 = vcmp.lt.s32.totalorder %v454, 0
      %v463 = vsub.s32 0, %v454
      %v464 = vsel %vm462, %v463, %v454
      %v465 = vshrl.u32 %v464, 4
      %v466 = vand.u32 %v464, 15
      %v467 = vsub.s32 0, %v466
      %v468 = vsel %vm462, %v467, %v466
      %vm469 = vcmp.ne.s32.totalorder %v461, 0
      %vm470 = vcmp.ne.s32.totalorder %v468, 0
      %vm471 = vcmp.lt.s32.totalorder %v461, 0
      %vm472 = vcmp.lt.s32.totalorder %v468, 0
      %vm473 = vmand %vm471, %vm469
      %vm474 = vmand %vm472, %vm470
      %v475 = vadd.s32 %v461, 16
      %v476 = vadd.s32 %v468, 16
      %v477 = vsel %vm473, %v475, %v461
      %v478 = vsel %vm474, %v476, %v468
      %485 = vrot.lane.b32.xlu0 %v446, 32
      %v486 = vpop.permute.xlu0 %485
      %487 = vrot.lane.b32.xlu0 %v447, 32
      %v488 = vpop.permute.xlu0 %487
      %489 = vrot.lane.b32.xlu0 %v448, 32
      %v490 = vpop.permute.xlu0 %489
      %491 = vrot.lane.b32.xlu0 %v449, 32
      %v492 = vpop.permute.xlu0 %491
      %493 = vrot.lane.b32.xlu0 %v450, 32
      %v494 = vpop.permute.xlu0 %493
      %495 = vrot.lane.b32.xlu0 %v451, 32
      %v496 = vpop.permute.xlu0 %495
      %vm497 = vcmask 261120
      %v498 = vsel %vm497, %v486, %v488
      %v499 = vsel %vm497, %v490, %v492
      %v500 = vsel %vm497, %v494, %v496
      %v507 = vsel %vm497, 0.0, %v486
      %v508 = vsel %vm497, 0.0, %v490
      %v509 = vsel %vm497, 0.0, %v494
      %v510 = vsel %vm497, %v488, 0.0
      %v511 = vsel %vm497, %v492, 0.0
      %514 = vrot.lane.b32.xlu0 %v507, 16
      %v515 = vpop.permute.xlu0 %514
      %516 = vrot.lane.b32.xlu0 %v498, 16
      %v517 = vpop.permute.xlu0 %516
      %518 = vrot.lane.b32.xlu0 %v510, 16
      %v519 = vpop.permute.xlu0 %518
      %vm520 = vcmask 130048
      %v521 = vsel %vm520, %v515, %v517
      %v522 = vsel %vm520, %v517, %v519
      %528 = vrot.lane.b32.xlu0 %v508, 32
      %v529 = vpop.permute.xlu0 %528
      %530 = vrot.lane.b32.xlu0 %v499, 32
      %v531 = vpop.permute.xlu0 %530
      %532 = vrot.lane.b32.xlu0 %v511, 32
      %v533 = vpop.permute.xlu0 %532
      %v534 = vsel %vm497, %v529, %v531
      %v535 = vsel %vm497, %v531, %v533
      %539 = vrot.lane.b32.xlu0 %v508, 48
      %v540 = vpop.permute.xlu0 %539
      %541 = vrot.lane.b32.xlu0 %v499, 48
      %v542 = vpop.permute.xlu0 %541
      %543 = vrot.lane.b32.xlu0 %v511, 48
      %v544 = vpop.permute.xlu0 %543
      %vm545 = vcmask 392192
      %v546 = vsel %vm545, %v540, %v542
      %v547 = vsel %vm545, %v542, %v544
      %552 = vrot.lane.b32.xlu0 %v509, 64
      %v553 = vpop.permute.xlu0 %552
      %554 = vrot.lane.b32.xlu0 %v500, 64
      %v555 = vpop.permute.xlu0 %554
      %vm556 = vcmask 523264
      %v557 = vsel %vm556, %v553, %v555
      %v561 = vsel %vm341, %v507, %v515
      %v562 = vsel %vm341, %v498, %v521
      %v563 = vsel %vm341, %v510, %v522
      %v564 = vsel %vm341, %v529, %v540
      %v565 = vsel %vm341, %v534, %v546
      %v566 = vsel %vm341, %v535, %v547
      %v567 = vld [vmem:[%s3] sm:$0xf]
      %v568 = vld [vmem:[%s3 + $0x4] sm:$0xf]
      %v569 = vld [vmem:[%s3 + $0x8] sm:$0x3]
      %v570 = vpack.c.bf16 %v564, %v561
      %v571 = vpack.c.bf16 %v565, %v562
      %v572 = vpack.c.bf16 %v566, %v563
      %v573 = vpack.c.bf16 %v553, %v553
      %v574 = vpack.c.bf16 %v557, %v557
      %v575 = vpack.c.bf16 %v555, %v555
      %v576 = vld [vmem:[%s4] sm:$0xff]
      %v577 = vld [vmem:[%s4 + $0x8] sm:$0xff]
      %v578 = vld [vmem:[%s4 + $0x10] sm:$0xf]
      %580 = vset.pattern.permute.xlu0 0
      %581 = vperm.xlu0 %580, %v576
      %v582 = vpop.permute.xlu0 %581
      %585 = vset.pattern.permute.xlu0 0
      %586 = vperm.xlu0 %585, %v577
      %v587 = vpop.permute.xlu0 %586
      %590 = vset.pattern.permute.xlu0 0
      %591 = vperm.xlu0 %590, %v578
      %v592 = vpop.permute.xlu0 %591
      %v597 = vunpack.c.l.b16 %v567
      %v598 = vunpack.c.l.b16 %v568
      %v599 = vunpack.c.l.b16 %v569
      %v600 = vpack.c.b16 %v598, %v597
      %v601 = vpack.c.b16 %v599, %v599
      %608 = vrot.lane.b32.xlu0 %v570, 64
      %v609 = vpop.permute.xlu0 %608
      %610 = vrot.lane.b32.xlu0 %v571, 64
      %v611 = vpop.permute.xlu0 %610
      %612 = vrot.lane.b32.xlu0 %v572, 64
      %v613 = vpop.permute.xlu0 %612
      %614 = vrot.lane.b32.xlu0 %v573, 64
      %v615 = vpop.permute.xlu0 %614
      %616 = vrot.lane.b32.xlu0 %v574, 64
      %v617 = vpop.permute.xlu0 %616
      %618 = vrot.lane.b32.xlu0 %v575, 64
      %v619 = vpop.permute.xlu0 %618
      %vm620 = vcmask 523264
      %v621 = vsel %vm620, %v609, %v611
      %v622 = vsel %vm620, %v611, %v613
      %v623 = vsel %vm620, %v615, %v617
      %v624 = vsel %vm620, %v617, %v619
      %vm627 = vcmask 162816
      %v629 = vsel %vm627, %v600, 0
      %v632 = vsel %vm627, %v601, 0
      %vm634 = vcmask 1041408
      %v636 = vsel %vm634, %v623, 0
      %v639 = vsel %vm634, %v624, 0
      %641 = vmatprep.subr.bf16.mxu0 0
      %642 = vmatpush1.bf16.msra.mxu0 0
      %643 = vmatprep.subr.bf16.mxu0 0
      %644 = vmatpush1.bf16.msra.mxu0 0
      %645 = vmatprep.subr.bf16.mxu0 0
      %646 = vmatpush1.bf16.msra.mxu0 0
      %647 = vmatprep.subr.bf16.mxu0 0
      %648 = vmatpush1.bf16.msra.mxu0 0
      %649 = vmatprep.subr.bf16.mxu0 0
      %650 = vmatpush1.bf16.msra.mxu0 0
      %651 = vmatprep.subr.bf16.mxu0 0
      %652 = vmatpush1.bf16.msra.mxu0 0
      %653 = vmatprep.subr.bf16.mxu0 %v639
      %654 = vmatpush1.bf16.msra.mxu0 %v636
      %655 = vmatprep.subr.bf16.mxu0 %v622
      %656 = vmatpush1.bf16.msra.mxu0 %v621
      %657 = vmatprep.subr.bf16.mxu0 0
      %658 = vmatpush2.bf16.msra.mxu0 0
      %659 = vmatprep.subr.bf16.mxu0 0
      %660 = vmatpush2.bf16.msra.mxu0 0
      %661 = vmatprep.subr.bf16.mxu0 0
      %662 = vmatpush2.bf16.msra.mxu0 0
      %663 = vmatprep.subr.bf16.mxu0 0
      %664 = vmatpush2.bf16.msra.mxu0 0
      %665 = vmatprep.subr.bf16.mxu0 0
      %666 = vmatpush2.bf16.msra.mxu0 0
      %667 = vmatprep.subr.bf16.mxu0 0
      %668 = vmatpush2.bf16.msra.mxu0 0
      %669 = vmatprep.subr.bf16.mxu0 0
      %670 = vmatpush2.bf16.msra.mxu0 0
      %671 = vmatprep.subr.bf16.mxu0 0
      %672 = vmatpush2.bf16.msra.mxu0 0
      %673 = vmatprep.mubr.bf16.mxu0 0
      %674 = vmatmul.mubr.bf16.gmra.mxu0 %v629
      %v675 = vpop.f32.mrf.mxu0
      %v676 = vadd.f32 %v582, %v675
      %v677 = vpop.f32.mrf.mxu0
      %v678 = vadd.f32 %v582, %v677
      %v679 = vpop.f32.mrf.mxu0
      %v680 = vadd.f32 %v587, %v679
      %v681 = vpop.f32.mrf.mxu0
      %v682 = vadd.f32 %v587, %v681
      %683 = vmatprep.mubr.bf16.mxu0 0
      %684 = vmatmul.mubr.bf16.gmra.mxu0 %v632
      %v685 = vpop.f32.mrf.mxu0
      %v686 = vadd.f32 %v592, %v685
      %v687 = vpop.f32.mrf.mxu0
      %v688 = vadd.f32 %v592, %v687
      %v689 = vpop.f32.mrf.mxu0
      %v690 = vpop.f32.mrf.mxu0
      %691 = vdwg.mxu0
      %v692 = vld [vmem:[%s5] sm:$0xff]
      %v693 = vld [vmem:[%s5 + $0x8] sm:$0xff]
      %v694 = vld [vmem:[%s5 + $0x10] sm:$0xf]
      %vm695 = vcmp.ge.s32.totalorder %v477, 1
      %vm696 = vcmp.ge.s32.totalorder %v478, 1
      %v697 = vsel %vm695, 1, 0
      %v698 = vsel %vm696, 1, 0
      %v699 = vcvt.s32.f32 %v697
      %v700 = vcvt.s32.f32 %v698
      %vm701 = vcmp.lt.s32.totalorder %v477, 15
      %vm702 = vcmp.lt.s32.totalorder %v478, 15
      %v703 = vsel %vm701, 1, 0
      %v704 = vsel %vm702, 1, 0
      %v705 = vcvt.s32.f32 %v703
      %v706 = vcvt.s32.f32 %v704
      %713 = vrot.lane.b32.xlu0 %v676, 17
      %v714 = vpop.permute.xlu0 %713
      %715 = vrot.lane.b32.xlu0 %v678, 17
      %v716 = vpop.permute.xlu0 %715
      %717 = vrot.lane.b32.xlu0 %v680, 17
      %v718 = vpop.permute.xlu0 %717
      %719 = vrot.lane.b32.xlu0 %v682, 17
      %v720 = vpop.permute.xlu0 %719
      %721 = vrot.lane.b32.xlu0 %v686, 17
      %v722 = vpop.permute.xlu0 %721
      %723 = vrot.lane.b32.xlu0 %v688, 17
      %v724 = vpop.permute.xlu0 %723
      %vm725 = vcmask 138240
      %v726 = vsel %vm725, %v714, %v716
      %v727 = vsel %vm725, %v718, %v720
      %v728 = vsel %vm725, %v722, %v724
      %v738 = vsel %vm725, 0.0, %v714
      %v739 = vsel %vm725, 0.0, %v718
      %v740 = vsel %vm725, 0.0, %v722
      %v741 = vsel %vm725, %v716, 0.0
      %v742 = vsel %vm725, %v720, 0.0
      %v743 = vsel %vm725, %v724, 0.0
      %v744 = vmul.f32 %v738, %v699
      %v745 = vmul.f32 %v726, %v700
      %v746 = vmul.f32 %v739, %v699
      %v747 = vmul.f32 %v727, %v700
      %v748 = vmul.f32 %v740, %v699
      %v749 = vmul.f32 %v728, %v700
      %751 = vset.pattern.permute.xlu0 0
      %752 = vperm.xlu0 %751, %v692
      %v753 = vpop.permute.xlu0 %752
      %756 = vset.pattern.permute.xlu0 0
      %757 = vperm.xlu0 %756, %v693
      %v758 = vpop.permute.xlu0 %757
      %761 = vset.pattern.permute.xlu0 0
      %762 = vperm.xlu0 %761, %v694
      %v763 = vpop.permute.xlu0 %762
      %v765 = vmul.f32 %v744, %v753
      %v766 = vmul.f32 %v745, %v753
      %v767 = vmul.f32 %v746, %v758
      %v768 = vmul.f32 %v747, %v758
      %v769 = vmul.f32 %v748, %v763
      %v770 = vmul.f32 %v749, %v763
      %v771 = vadd.f32 %v765, 0.0
      %v772 = vadd.f32 %v766, 0.0
      %v773 = vadd.f32 %v767, 0.0
      %v774 = vadd.f32 %v768, 0.0
      %v775 = vadd.f32 %v769, 0.0
      %v776 = vadd.f32 %v770, 0.0
      %777 = vset.pattern.permute.xlu0 1
      %778 = vperm.xlu0 %777, %v692
      %v779 = vpop.permute.xlu0 %778
      %781 = vset.pattern.permute.xlu0 1
      %782 = vperm.xlu0 %781, %v693
      %v783 = vpop.permute.xlu0 %782
      %785 = vset.pattern.permute.xlu0 1
      %786 = vperm.xlu0 %785, %v694
      %v787 = vpop.permute.xlu0 %786
      %v789 = vmul.f32 %v738, %v779
      %v790 = vmul.f32 %v726, %v779
      %v791 = vmul.f32 %v741, %v779
      %v792 = vmul.f32 %v739, %v783
      %v793 = vmul.f32 %v727, %v783
      %v794 = vmul.f32 %v742, %v783
      %v795 = vmul.f32 %v740, %v787
      %v796 = vmul.f32 %v728, %v787
      %v797 = vmul.f32 %v743, %v787
      %807 = vrot.lane.b32.xlu0 %v789, 127
      %v808 = vpop.permute.xlu0 %807
      %809 = vrot.lane.b32.xlu0 %v790, 127
      %v810 = vpop.permute.xlu0 %809
      %811 = vrot.lane.b32.xlu0 %v791, 127
      %v812 = vpop.permute.xlu0 %811
      %813 = vrot.lane.b32.xlu0 %v792, 127
      %v814 = vpop.permute.xlu0 %813
      %815 = vrot.lane.b32.xlu0 %v793, 127
      %v816 = vpop.permute.xlu0 %815
      %817 = vrot.lane.b32.xlu0 %v794, 127
      %v818 = vpop.permute.xlu0 %817
      %819 = vrot.lane.b32.xlu0 %v795, 127
      %v820 = vpop.permute.xlu0 %819
      %821 = vrot.lane.b32.xlu0 %v796, 127
      %v822 = vpop.permute.xlu0 %821
      %823 = vrot.lane.b32.xlu0 %v797, 127
      %v824 = vpop.permute.xlu0 %823
      %vm825 = vcmask 1039360
      %v826 = vsel %vm825, %v808, %v810
      %v827 = vsel %vm825, %v810, %v812
      %v828 = vsel %vm825, %v814, %v816
      %v829 = vsel %vm825, %v816, %v818
      %v830 = vsel %vm825, %v820, %v822
      %v831 = vsel %vm825, %v822, %v824
      %v838 = vadd.f32 %v771, %v826
      %v839 = vadd.f32 %v772, %v827
      %v840 = vadd.f32 %v773, %v828
      %v841 = vadd.f32 %v774, %v829
      %v842 = vadd.f32 %v775, %v830
      %v843 = vadd.f32 %v776, %v831
      %846 = vrot.lane.b32.xlu0 %v705, 2
      %v847 = vpop.permute.xlu0 %846
      %848 = vrot.lane.b32.xlu0 %v706, 2
      %v849 = vpop.permute.xlu0 %848
      %vm850 = vcmask 15360
      %v851 = vsel %vm850, %v847, %v849
      %v855 = vmul.f32 %v738, %v847
      %v856 = vmul.f32 %v726, %v851
      %v857 = vmul.f32 %v741, %v849
      %v858 = vmul.f32 %v739, %v847
      %v859 = vmul.f32 %v727, %v851
      %v860 = vmul.f32 %v742, %v849
      %v861 = vmul.f32 %v740, %v847
      %v862 = vmul.f32 %v728, %v851
      %v863 = vmul.f32 %v743, %v849
      %864 = vset.pattern.permute.xlu0 2
      %865 = vperm.xlu0 %864, %v692
      %v866 = vpop.permute.xlu0 %865
      %868 = vset.pattern.permute.xlu0 2
      %869 = vperm.xlu0 %868, %v693
      %v870 = vpop.permute.xlu0 %869
      %872 = vset.pattern.permute.xlu0 2
      %873 = vperm.xlu0 %872, %v694
      %v874 = vpop.permute.xlu0 %873
      %v876 = vmul.f32 %v855, %v866
      %v877 = vmul.f32 %v856, %v866
      %v878 = vmul.f32 %v857, %v866
      %v879 = vmul.f32 %v858, %v870
      %v880 = vmul.f32 %v859, %v870
      %v881 = vmul.f32 %v860, %v870
      %v882 = vmul.f32 %v861, %v874
      %v883 = vmul.f32 %v862, %v874
      %v884 = vmul.f32 %v863, %v874
      %894 = vrot.lane.b32.xlu0 %v876, 126
      %v895 = vpop.permute.xlu0 %894
      %896 = vrot.lane.b32.xlu0 %v877, 126
      %v897 = vpop.permute.xlu0 %896
      %898 = vrot.lane.b32.xlu0 %v878, 126
      %v899 = vpop.permute.xlu0 %898
      %900 = vrot.lane.b32.xlu0 %v879, 126
      %v901 = vpop.permute.xlu0 %900
      %902 = vrot.lane.b32.xlu0 %v880, 126
      %v903 = vpop.permute.xlu0 %902
      %904 = vrot.lane.b32.xlu0 %v881, 126
      %v905 = vpop.permute.xlu0 %904
      %906 = vrot.lane.b32.xlu0 %v882, 126
      %v907 = vpop.permute.xlu0 %906
      %908 = vrot.lane.b32.xlu0 %v883, 126
      %v909 = vpop.permute.xlu0 %908
      %910 = vrot.lane.b32.xlu0 %v884, 126
      %v911 = vpop.permute.xlu0 %910
      %vm912 = vcmask 1031168
      %v913 = vsel %vm912, %v895, %v897
      %v914 = vsel %vm912, %v897, %v899
      %v915 = vsel %vm912, %v901, %v903
      %v916 = vsel %vm912, %v903, %v905
      %v917 = vsel %vm912, %v907, %v909
      %v918 = vsel %vm912, %v909, %v911
      %v925 = vadd.f32 %v838, %v913
      %v926 = vadd.f32 %v839, %v914
      %v927 = vadd.f32 %v840, %v915
      %v928 = vadd.f32 %v841, %v916
      %v929 = vadd.f32 %v842, %v917
      %v930 = vadd.f32 %v843, %v918
      %933 = vrot.lane.b32.xlu0 %v699, 16
      %v934 = vpop.permute.xlu0 %933
      %935 = vrot.lane.b32.xlu0 %v700, 16
      %v936 = vpop.permute.xlu0 %935
      %v937 = vsel %vm520, %v934, %v936
      %v941 = vmul.f32 %v738, %v934
      %v942 = vmul.f32 %v726, %v937
      %v943 = vmul.f32 %v741, %v936
      %v944 = vmul.f32 %v739, %v934
      %v945 = vmul.f32 %v727, %v937
      %v946 = vmul.f32 %v742, %v936
      %v947 = vmul.f32 %v740, %v934
      %v948 = vmul.f32 %v728, %v937
      %v949 = vmul.f32 %v743, %v936
      %950 = vset.pattern.permute.xlu0 3
      %951 = vperm.xlu0 %950, %v692
      %v952 = vpop.permute.xlu0 %951
      %954 = vset.pattern.permute.xlu0 3
      %955 = vperm.xlu0 %954, %v693
      %v956 = vpop.permute.xlu0 %955
      %958 = vset.pattern.permute.xlu0 3
      %959 = vperm.xlu0 %958, %v694
      %v960 = vpop.permute.xlu0 %959
      %v962 = vmul.f32 %v941, %v952
      %v963 = vmul.f32 %v942, %v952
      %v964 = vmul.f32 %v943, %v952
      %v965 = vmul.f32 %v944, %v956
      %v966 = vmul.f32 %v945, %v956
      %v967 = vmul.f32 %v946, %v956
      %v968 = vmul.f32 %v947, %v960
      %v969 = vmul.f32 %v948, %v960
      %v970 = vmul.f32 %v949, %v960
      %980 = vrot.lane.b32.xlu0 %v962, 112
      %v981 = vpop.permute.xlu0 %980
      %982 = vrot.lane.b32.xlu0 %v963, 112
      %v983 = vpop.permute.xlu0 %982
      %984 = vrot.lane.b32.xlu0 %v964, 112
      %v985 = vpop.permute.xlu0 %984
      %986 = vrot.lane.b32.xlu0 %v965, 112
      %v987 = vpop.permute.xlu0 %986
      %988 = vrot.lane.b32.xlu0 %v966, 112
      %v989 = vpop.permute.xlu0 %988
      %990 = vrot.lane.b32.xlu0 %v967, 112
      %v991 = vpop.permute.xlu0 %990
      %992 = vrot.lane.b32.xlu0 %v968, 112
      %v993 = vpop.permute.xlu0 %992
      %994 = vrot.lane.b32.xlu0 %v969, 112
      %v995 = vpop.permute.xlu0 %994
      %996 = vrot.lane.b32.xlu0 %v970, 112
      %v997 = vpop.permute.xlu0 %996
      %vm998 = vcmask 916480
      %v999 = vsel %vm998, %v981, %v983
      %v1000 = vsel %vm998, %v983, %v985
      %v1001 = vsel %vm998, %v987, %v989
      %v1002 = vsel %vm998, %v989, %v991
      %v1003 = vsel %vm998, %v993, %v995
      %v1004 = vsel %vm998, %v995, %v997
      %v1011 = vadd.f32 %v925, %v999
      %v1012 = vadd.f32 %v926, %v1000
      %v1013 = vadd.f32 %v927, %v1001
      %v1014 = vadd.f32 %v928, %v1002
      %v1015 = vadd.f32 %v929, %v1003
      %v1016 = vadd.f32 %v930, %v1004
      %1017 = vset.pattern.permute.xlu0 4
      %1018 = vperm.xlu0 %1017, %v692
      %v1019 = vpop.permute.xlu0 %1018
      %1021 = vset.pattern.permute.xlu0 4
      %1022 = vperm.xlu0 %1021, %v693
      %v1023 = vpop.permute.xlu0 %1022
      %1025 = vset.pattern.permute.xlu0 4
      %1026 = vperm.xlu0 %1025, %v694
      %v1027 = vpop.permute.xlu0 %1026
      %v1029 = vmul.f32 %v738, %v1019
      %v1030 = vmul.f32 %v726, %v1019
      %v1031 = vmul.f32 %v741, %v1019
      %v1032 = vmul.f32 %v739, %v1023
      %v1033 = vmul.f32 %v727, %v1023
      %v1034 = vmul.f32 %v742, %v1023
      %v1035 = vmul.f32 %v740, %v1027
      %v1036 = vmul.f32 %v728, %v1027
      %v1037 = vmul.f32 %v743, %v1027
      %1047 = vrot.lane.b32.xlu0 %v1029, 111
      %v1048 = vpop.permute.xlu0 %1047
      %1049 = vrot.lane.b32.xlu0 %v1030, 111
      %v1050 = vpop.permute.xlu0 %1049
      %1051 = vrot.lane.b32.xlu0 %v1031, 111
      %v1052 = vpop.permute.xlu0 %1051
      %1053 = vrot.lane.b32.xlu0 %v1032, 111
      %v1054 = vpop.permute.xlu0 %1053
      %1055 = vrot.lane.b32.xlu0 %v1033, 111
      %v1056 = vpop.permute.xlu0 %1055
      %1057 = vrot.lane.b32.xlu0 %v1034, 111
      %v1058 = vpop.permute.xlu0 %1057
      %1059 = vrot.lane.b32.xlu0 %v1035, 111
      %v1060 = vpop.permute.xlu0 %1059
      %1061 = vrot.lane.b32.xlu0 %v1036, 111
      %v1062 = vpop.permute.xlu0 %1061
      %1063 = vrot.lane.b32.xlu0 %v1037, 111
      %v1064 = vpop.permute.xlu0 %1063
      %vm1065 = vcmask 908288
      %v1066 = vsel %vm1065, %v1048, %v1050
      %v1067 = vsel %vm1065, %v1050, %v1052
      %v1068 = vsel %vm1065, %v1054, %v1056
      %v1069 = vsel %vm1065, %v1056, %v1058
      %v1070 = vsel %vm1065, %v1060, %v1062
      %v1071 = vsel %vm1065, %v1062, %v1064
      %v1078 = vadd.f32 %v1011, %v1066
      %v1079 = vadd.f32 %v1012, %v1067
      %v1080 = vadd.f32 %v1013, %v1068
      %v1081 = vadd.f32 %v1014, %v1069
      %v1082 = vadd.f32 %v1015, %v1070
      %v1083 = vadd.f32 %v1016, %v1071
      %1084 = vrot.lane.b32.xlu0 %v705, 18
      %v1085 = vpop.permute.xlu0 %1084
      %1086 = vrot.lane.b32.xlu0 %v706, 18
      %v1087 = vpop.permute.xlu0 %1086
      %vm1088 = vcmask 146432
      %v1089 = vsel %vm1088, %v1085, %v1087
      %v1093 = vmul.f32 %v738, %v1085
      %v1094 = vmul.f32 %v726, %v1089
      %v1095 = vmul.f32 %v741, %v1087
      %v1096 = vmul.f32 %v739, %v1085
      %v1097 = vmul.f32 %v727, %v1089
      %v1098 = vmul.f32 %v742, %v1087
      %v1099 = vmul.f32 %v740, %v1085
      %v1100 = vmul.f32 %v728, %v1089
      %v1101 = vmul.f32 %v743, %v1087
      %1102 = vset.pattern.permute.xlu0 5
      %1103 = vperm.xlu0 %1102, %v692
      %v1104 = vpop.permute.xlu0 %1103
      %1106 = vset.pattern.permute.xlu0 5
      %1107 = vperm.xlu0 %1106, %v693
      %v1108 = vpop.permute.xlu0 %1107
      %1110 = vset.pattern.permute.xlu0 5
      %1111 = vperm.xlu0 %1110, %v694
      %v1112 = vpop.permute.xlu0 %1111
      %v1114 = vmul.f32 %v1093, %v1104
      %v1115 = vmul.f32 %v1094, %v1104
      %v1116 = vmul.f32 %v1095, %v1104
      %v1117 = vmul.f32 %v1096, %v1108
      %v1118 = vmul.f32 %v1097, %v1108
      %v1119 = vmul.f32 %v1098, %v1108
      %v1120 = vmul.f32 %v1099, %v1112
      %v1121 = vmul.f32 %v1100, %v1112
      %v1122 = vmul.f32 %v1101, %v1112
      %1132 = vrot.lane.b32.xlu0 %v1114, 110
      %v1133 = vpop.permute.xlu0 %1132
      %1134 = vrot.lane.b32.xlu0 %v1115, 110
      %v1135 = vpop.permute.xlu0 %1134
      %1136 = vrot.lane.b32.xlu0 %v1116, 110
      %v1137 = vpop.permute.xlu0 %1136
      %1138 = vrot.lane.b32.xlu0 %v1117, 110
      %v1139 = vpop.permute.xlu0 %1138
      %1140 = vrot.lane.b32.xlu0 %v1118, 110
      %v1141 = vpop.permute.xlu0 %1140
      %1142 = vrot.lane.b32.xlu0 %v1119, 110
      %v1143 = vpop.permute.xlu0 %1142
      %1144 = vrot.lane.b32.xlu0 %v1120, 110
      %v1145 = vpop.permute.xlu0 %1144
      %1146 = vrot.lane.b32.xlu0 %v1121, 110
      %v1147 = vpop.permute.xlu0 %1146
      %1148 = vrot.lane.b32.xlu0 %v1122, 110
      %v1149 = vpop.permute.xlu0 %1148
      %vm1150 = vcmask 900096
      %v1151 = vsel %vm1150, %v1133, %v1135
      %v1152 = vsel %vm1150, %v1135, %v1137
      %v1153 = vsel %vm1150, %v1139, %v1141
      %v1154 = vsel %vm1150, %v1141, %v1143
      %v1155 = vsel %vm1150, %v1145, %v1147
      %v1156 = vsel %vm1150, %v1147, %v1149
      %v1163 = vadd.f32 %v1078, %v1151
      %v1164 = vadd.f32 %v1079, %v1152
      %v1165 = vadd.f32 %v1080, %v1153
      %v1166 = vadd.f32 %v1081, %v1154
      %v1167 = vadd.f32 %v1082, %v1155
      %v1168 = vadd.f32 %v1083, %v1156
      %1169 = vrot.lane.b32.xlu0 %v699, 32
      %v1170 = vpop.permute.xlu0 %1169
      %1171 = vrot.lane.b32.xlu0 %v700, 32
      %v1172 = vpop.permute.xlu0 %1171
      %v1173 = vsel %vm497, %v1170, %v1172
      %v1177 = vmul.f32 %v738, %v1170
      %v1178 = vmul.f32 %v726, %v1173
      %v1179 = vmul.f32 %v741, %v1172
      %v1180 = vmul.f32 %v739, %v1170
      %v1181 = vmul.f32 %v727, %v1173
      %v1182 = vmul.f32 %v742, %v1172
      %v1183 = vmul.f32 %v740, %v1170
      %v1184 = vmul.f32 %v728, %v1173
      %v1185 = vmul.f32 %v743, %v1172
      %1186 = vset.pattern.permute.xlu0 6
      %1187 = vperm.xlu0 %1186, %v692
      %v1188 = vpop.permute.xlu0 %1187
      %1190 = vset.pattern.permute.xlu0 6
      %1191 = vperm.xlu0 %1190, %v693
      %v1192 = vpop.permute.xlu0 %1191
      %1194 = vset.pattern.permute.xlu0 6
      %1195 = vperm.xlu0 %1194, %v694
      %v1196 = vpop.permute.xlu0 %1195
      %v1198 = vmul.f32 %v1177, %v1188
      %v1199 = vmul.f32 %v1178, %v1188
      %v1200 = vmul.f32 %v1179, %v1188
      %v1201 = vmul.f32 %v1180, %v1192
      %v1202 = vmul.f32 %v1181, %v1192
      %v1203 = vmul.f32 %v1182, %v1192
      %v1204 = vmul.f32 %v1183, %v1196
      %v1205 = vmul.f32 %v1184, %v1196
      %v1206 = vmul.f32 %v1185, %v1196
      %1216 = vrot.lane.b32.xlu0 %v1198, 96
      %v1217 = vpop.permute.xlu0 %1216
      %1218 = vrot.lane.b32.xlu0 %v1199, 96
      %v1219 = vpop.permute.xlu0 %1218
      %1220 = vrot.lane.b32.xlu0 %v1200, 96
      %v1221 = vpop.permute.xlu0 %1220
      %1222 = vrot.lane.b32.xlu0 %v1201, 96
      %v1223 = vpop.permute.xlu0 %1222
      %1224 = vrot.lane.b32.xlu0 %v1202, 96
      %v1225 = vpop.permute.xlu0 %1224
      %1226 = vrot.lane.b32.xlu0 %v1203, 96
      %v1227 = vpop.permute.xlu0 %1226
      %1228 = vrot.lane.b32.xlu0 %v1204, 96
      %v1229 = vpop.permute.xlu0 %1228
      %1230 = vrot.lane.b32.xlu0 %v1205, 96
      %v1231 = vpop.permute.xlu0 %1230
      %1232 = vrot.lane.b32.xlu0 %v1206, 96
      %v1233 = vpop.permute.xlu0 %1232
      %vm1234 = vcmask 785408
      %v1235 = vsel %vm1234, %v1217, %v1219
      %v1236 = vsel %vm1234, %v1219, %v1221
      %v1237 = vsel %vm1234, %v1223, %v1225
      %v1238 = vsel %vm1234, %v1225, %v1227
      %v1239 = vsel %vm1234, %v1229, %v1231
      %v1240 = vsel %vm1234, %v1231, %v1233
      %v1247 = vadd.f32 %v1163, %v1235
      %v1248 = vadd.f32 %v1164, %v1236
      %v1249 = vadd.f32 %v1165, %v1237
      %v1250 = vadd.f32 %v1166, %v1238
      %v1251 = vadd.f32 %v1167, %v1239
      %v1252 = vadd.f32 %v1168, %v1240
      %1253 = vset.pattern.permute.xlu0 7
      %1254 = vperm.xlu0 %1253, %v692
      %v1255 = vpop.permute.xlu0 %1254
      %1257 = vset.pattern.permute.xlu0 7
      %1258 = vperm.xlu0 %1257, %v693
      %v1259 = vpop.permute.xlu0 %1258
      %1261 = vset.pattern.permute.xlu0 7
      %1262 = vperm.xlu0 %1261, %v694
      %v1263 = vpop.permute.xlu0 %1262
      %v1265 = vmul.f32 %v738, %v1255
      %v1266 = vmul.f32 %v726, %v1255
      %v1267 = vmul.f32 %v741, %v1255
      %v1268 = vmul.f32 %v739, %v1259
      %v1269 = vmul.f32 %v727, %v1259
      %v1270 = vmul.f32 %v742, %v1259
      %v1271 = vmul.f32 %v740, %v1263
      %v1272 = vmul.f32 %v728, %v1263
      %v1273 = vmul.f32 %v743, %v1263
      %1283 = vrot.lane.b32.xlu0 %v1265, 95
      %v1284 = vpop.permute.xlu0 %1283
      %1285 = vrot.lane.b32.xlu0 %v1266, 95
      %v1286 = vpop.permute.xlu0 %1285
      %1287 = vrot.lane.b32.xlu0 %v1267, 95
      %v1288 = vpop.permute.xlu0 %1287
      %1289 = vrot.lane.b32.xlu0 %v1268, 95
      %v1290 = vpop.permute.xlu0 %1289
      %1291 = vrot.lane.b32.xlu0 %v1269, 95
      %v1292 = vpop.permute.xlu0 %1291
      %1293 = vrot.lane.b32.xlu0 %v1270, 95
      %v1294 = vpop.permute.xlu0 %1293
      %1295 = vrot.lane.b32.xlu0 %v1271, 95
      %v1296 = vpop.permute.xlu0 %1295
      %1297 = vrot.lane.b32.xlu0 %v1272, 95
      %v1298 = vpop.permute.xlu0 %1297
      %1299 = vrot.lane.b32.xlu0 %v1273, 95
      %v1300 = vpop.permute.xlu0 %1299
      %vm1301 = vcmask 777216
      %v1302 = vsel %vm1301, %v1284, %v1286
      %v1303 = vsel %vm1301, %v1286, %v1288
      %v1304 = vsel %vm1301, %v1290, %v1292
      %v1305 = vsel %vm1301, %v1292, %v1294
      %v1306 = vsel %vm1301, %v1296, %v1298
      %v1307 = vsel %vm1301, %v1298, %v1300
      %v1314 = vadd.f32 %v1247, %v1302
      %v1315 = vadd.f32 %v1248, %v1303
      %v1316 = vadd.f32 %v1249, %v1304
      %v1317 = vadd.f32 %v1250, %v1305
      %v1318 = vadd.f32 %v1251, %v1306
      %v1319 = vadd.f32 %v1252, %v1307
      %1320 = vrot.lane.b32.xlu0 %v705, 34
      %v1321 = vpop.permute.xlu0 %1320
      %1322 = vrot.lane.b32.xlu0 %v706, 34
      %v1323 = vpop.permute.xlu0 %1322
      %vm1324 = vcmask 277504
      %v1325 = vsel %vm1324, %v1321, %v1323
      %v1329 = vmul.f32 %v738, %v1321
      %v1330 = vmul.f32 %v726, %v1325
      %v1331 = vmul.f32 %v741, %v1323
      %v1332 = vmul.f32 %v739, %v1321
      %v1333 = vmul.f32 %v727, %v1325
      %v1334 = vmul.f32 %v742, %v1323
      %v1335 = vmul.f32 %v740, %v1321
      %v1336 = vmul.f32 %v728, %v1325
      %v1337 = vmul.f32 %v743, %v1323
      %1338 = vset.pattern.permute.xlu0 8
      %1339 = vperm.xlu0 %1338, %v692
      %v1340 = vpop.permute.xlu0 %1339
      %1342 = vset.pattern.permute.xlu0 8
      %1343 = vperm.xlu0 %1342, %v693
      %v1344 = vpop.permute.xlu0 %1343
      %1346 = vset.pattern.permute.xlu0 8
      %1347 = vperm.xlu0 %1346, %v694
      %v1348 = vpop.permute.xlu0 %1347
      %v1350 = vmul.f32 %v1329, %v1340
      %v1351 = vmul.f32 %v1330, %v1340
      %v1352 = vmul.f32 %v1331, %v1340
      %v1353 = vmul.f32 %v1332, %v1344
      %v1354 = vmul.f32 %v1333, %v1344
      %v1355 = vmul.f32 %v1334, %v1344
      %v1356 = vmul.f32 %v1335, %v1348
      %v1357 = vmul.f32 %v1336, %v1348
      %v1358 = vmul.f32 %v1337, %v1348
      %1368 = vrot.lane.b32.xlu0 %v1350, 94
      %v1369 = vpop.permute.xlu0 %1368
      %1370 = vrot.lane.b32.xlu0 %v1351, 94
      %v1371 = vpop.permute.xlu0 %1370
      %1372 = vrot.lane.b32.xlu0 %v1352, 94
      %v1373 = vpop.permute.xlu0 %1372
      %1374 = vrot.lane.b32.xlu0 %v1353, 94
      %v1375 = vpop.permute.xlu0 %1374
      %1376 = vrot.lane.b32.xlu0 %v1354, 94
      %v1377 = vpop.permute.xlu0 %1376
      %1378 = vrot.lane.b32.xlu0 %v1355, 94
      %v1379 = vpop.permute.xlu0 %1378
      %1380 = vrot.lane.b32.xlu0 %v1356, 94
      %v1381 = vpop.permute.xlu0 %1380
      %1382 = vrot.lane.b32.xlu0 %v1357, 94
      %v1383 = vpop.permute.xlu0 %1382
      %1384 = vrot.lane.b32.xlu0 %v1358, 94
      %v1385 = vpop.permute.xlu0 %1384
      %vm1386 = vcmask 769024
      %v1387 = vsel %vm1386, %v1369, %v1371
      %v1388 = vsel %vm1386, %v1371, %v1373
      %v1389 = vsel %vm1386, %v1375, %v1377
      %v1390 = vsel %vm1386, %v1377, %v1379
      %v1391 = vsel %vm1386, %v1381, %v1383
      %v1392 = vsel %vm1386, %v1383, %v1385
      %v1399 = vadd.f32 %v1314, %v1387
      %v1400 = vadd.f32 %v1315, %v1388
      %v1401 = vadd.f32 %v1316, %v1389
      %v1402 = vadd.f32 %v1317, %v1390
      %v1403 = vadd.f32 %v1318, %v1391
      %v1404 = vadd.f32 %v1319, %v1392
      %v1405 = vld [vmem:[%s6] sm:$0xff]
      %v1406 = vld [vmem:[%s6 + $0x8] sm:$0xff]
      %v1407 = vld [vmem:[%s6 + $0x10] sm:$0xf]
      %1409 = vset.pattern.permute.xlu0 0
      %1410 = vperm.xlu0 %1409, %v1405
      %v1411 = vpop.permute.xlu0 %1410
      %1414 = vset.pattern.permute.xlu0 0
      %1415 = vperm.xlu0 %1414, %v1406
      %v1416 = vpop.permute.xlu0 %1415
      %1419 = vset.pattern.permute.xlu0 0
      %1420 = vperm.xlu0 %1419, %v1407
      %v1421 = vpop.permute.xlu0 %1420
      %v1423 = vadd.f32 %v1399, %v1411
      %v1424 = vadd.f32 %v1400, %v1411
      %v1425 = vadd.f32 %v1401, %v1416
      %v1426 = vadd.f32 %v1402, %v1416
      %v1427 = vadd.f32 %v1403, %v1421
      %v1428 = vadd.f32 %v1404, %v1421
      %v1429 = vand.u32 2147483647, %v1423
      %v1430 = vand.u32 2147483647, %v1424
      %v1431 = vand.u32 2147483647, %v1425
      %v1432 = vand.u32 2147483647, %v1426
      %v1433 = vand.u32 2147483647, %v1427
      %v1434 = vand.u32 2147483647, %v1428
      %v1435 = vsub.f32 0.0, %v1429
      %v1436 = vsub.f32 0.0, %v1430
      %v1437 = vsub.f32 0.0, %v1431
      %v1438 = vsub.f32 0.0, %v1432
      %v1439 = vsub.f32 0.0, %v1433
      %v1440 = vsub.f32 0.0, %v1434
      %v1441 = vmul.f32 %v1435, 1.442695
      %v1442 = vpow.pop %v1441
      %v1443 = vmul.f32 %v1436, 1.442695
      %v1444 = vpow.pop %v1443
      %v1445 = vmul.f32 %v1437, 1.442695
      %v1446 = vpow.pop %v1445
      %v1447 = vmul.f32 %v1438, 1.442695
      %v1448 = vpow.pop %v1447
      %v1449 = vmul.f32 %v1439, 1.442695
      %v1450 = vpow.pop %v1449
      %v1451 = vmul.f32 %v1440, 1.442695
      %v1452 = vpow.pop %v1451
      %v1453 = vmul.f32 %v1442, %v1442
      %v1454 = vmul.f32 %v1444, %v1444
      %v1455 = vmul.f32 %v1446, %v1446
      %v1456 = vmul.f32 %v1448, %v1448
      %v1457 = vmul.f32 %v1450, %v1450
      %v1458 = vmul.f32 %v1452, %v1452
      %vm1459 = vcmp.ge.f32.partialorder %v1423, 0.0
      %vm1460 = vcmp.ge.f32.partialorder %v1424, 0.0
      %vm1461 = vcmp.ge.f32.partialorder %v1425, 0.0
      %vm1462 = vcmp.ge.f32.partialorder %v1426, 0.0
      %vm1463 = vcmp.ge.f32.partialorder %v1427, 0.0
      %vm1464 = vcmp.ge.f32.partialorder %v1428, 0.0
      %v1465 = vmul.f32 %v1442, 2.0
      %v1466 = vmul.f32 %v1444, 2.0
      %v1467 = vmul.f32 %v1446, 2.0
      %v1468 = vmul.f32 %v1448, 2.0
      %v1469 = vmul.f32 %v1450, 2.0
      %v1470 = vmul.f32 %v1452, 2.0
      %v1471 = vadd.f32 %v1465, 1.0
      %v1472 = vadd.f32 %v1466, 1.0
      %v1473 = vadd.f32 %v1467, 1.0
      %v1474 = vadd.f32 %v1468, 1.0
      %v1475 = vadd.f32 %v1469, 1.0
      %v1476 = vadd.f32 %v1470, 1.0
      %v1477 = vadd.f32 %v1453, %v1465
      %v1478 = vadd.f32 %v1454, %v1466
      %v1479 = vadd.f32 %v1455, %v1467
      %v1480 = vadd.f32 %v1456, %v1468
      %v1481 = vadd.f32 %v1457, %v1469
      %v1482 = vadd.f32 %v1458, %v1470
      %v1483 = vsel %vm1459, %v1471, %v1477
      %v1484 = vsel %vm1460, %v1472, %v1478
      %v1485 = vsel %vm1461, %v1473, %v1479
      %v1486 = vsel %vm1462, %v1474, %v1480
      %v1487 = vsel %vm1463, %v1475, %v1481
      %v1488 = vsel %vm1464, %v1476, %v1482
      %v1489 = vmul.f32 %v1453, 2.0
      %v1490 = vmul.f32 %v1454, 2.0
      %v1491 = vmul.f32 %v1455, 2.0
      %v1492 = vmul.f32 %v1456, 2.0
      %v1493 = vmul.f32 %v1457, 2.0
      %v1494 = vmul.f32 %v1458, 2.0
      %v1495 = vsel %vm1459, %v1489, 2.0
      %v1496 = vsel %vm1460, %v1490, 2.0
      %v1497 = vsel %vm1461, %v1491, 2.0
      %v1498 = vsel %vm1462, %v1492, 2.0
      %v1499 = vsel %vm1463, %v1493, 2.0
      %v1500 = vsel %vm1464, %v1494, 2.0
      %v1501 = vadd.f32 %v1483, %v1495
      %v1502 = vadd.f32 %v1484, %v1496
      %v1503 = vadd.f32 %v1485, %v1497
      %v1504 = vadd.f32 %v1486, %v1498
      %v1505 = vadd.f32 %v1487, %v1499
      %v1506 = vadd.f32 %v1488, %v1500
      %v1507 = vmul.f32 %v1423, %v1483
      %v1508 = vmul.f32 %v1424, %v1484
      %v1509 = vmul.f32 %v1425, %v1485
      %v1510 = vmul.f32 %v1426, %v1486
      %v1511 = vmul.f32 %v1427, %v1487
      %v1512 = vmul.f32 %v1428, %v1488
      %v1513 = vrcp.pop %v1501
      %v1514 = vrcp.pop %v1502
      %v1515 = vrcp.pop %v1503
      %v1516 = vrcp.pop %v1504
      %v1517 = vrcp.pop %v1505
      %v1518 = vrcp.pop %v1506
      %v1519 = vmul.f32 %v1507, %v1513
      %v1520 = vmul.f32 %v1508, %v1514
      %v1521 = vmul.f32 %v1509, %v1515
      %v1522 = vmul.f32 %v1510, %v1516
      %v1523 = vmul.f32 %v1511, %v1517
      %v1524 = vmul.f32 %v1512, %v1518
      %1531 = vrot.lane.b32.xlu0 %v1519, 2
      %v1532 = vpop.permute.xlu0 %1531
      %1533 = vrot.lane.b32.xlu0 %v1520, 2
      %v1534 = vpop.permute.xlu0 %1533
      %1535 = vrot.lane.b32.xlu0 %v1521, 2
      %v1536 = vpop.permute.xlu0 %1535
      %1537 = vrot.lane.b32.xlu0 %v1522, 2
      %v1538 = vpop.permute.xlu0 %1537
      %1539 = vrot.lane.b32.xlu0 %v1523, 2
      %v1540 = vpop.permute.xlu0 %1539
      %1541 = vrot.lane.b32.xlu0 %v1524, 2
      %v1542 = vpop.permute.xlu0 %1541
      %v1543 = vsel %vm850, %v1532, %v1534
      %v1544 = vsel %vm850, %v1536, %v1538
      %v1545 = vsel %vm850, %v1540, %v1542
      %v1552 = vsel %vm850, 0.0, %v1532
      %v1553 = vsel %vm850, 0.0, %v1536
      %v1554 = vsel %vm850, 0.0, %v1540
      %v1555 = vsel %vm850, %v1534, 0.0
      %v1556 = vsel %vm850, %v1538, 0.0
      %vm1557 = vcmp.lt.s32.totalorder %v477, 14
      %vm1558 = vcmp.lt.s32.totalorder %v478, 14
      %v1559 = vsel %vm1557, 1, 0
      %v1560 = vsel %vm1558, 1, 0
      %vm1561 = vcmp.eq.s32.totalorder %v1559, 1
      %vm1562 = vcmp.eq.s32.totalorder %v1560, 1
      %1565 = vrot.lane.b32.xlu0 %v1552, 124
      %v1566 = vpop.permute.xlu0 %1565
      %1567 = vrot.lane.b32.xlu0 %v1543, 124
      %v1568 = vpop.permute.xlu0 %1567
      %1569 = vrot.lane.b32.xlu0 %v1555, 124
      %v1570 = vpop.permute.xlu0 %1569
      %vm1571 = vcmask 1014784
      %v1572 = vsel %vm1571, %v1566, %v1568
      %v1573 = vsel %vm1571, %v1568, %v1570
      %v1576 = vsel %vm1561, %v1572, 0.0
      %v1577 = vsel %vm1562, %v1573, 0.0
      %vm1578 = vcmp.eq.s32.totalorder %v703, 1
      %vm1579 = vcmp.eq.s32.totalorder %v704, 1
      %v1580 = vrot.slane %v1552, 4
      %v1581 = vrot.slane %v1543, 4
      %v1582 = vrot.slane %v1555, 4
      %1583 = vrot.lane.b32.xlu0 %v1580, 125
      %v1584 = vpop.permute.xlu0 %1583
      %1585 = vrot.lane.b32.xlu0 %v1581, 125
      %v1586 = vpop.permute.xlu0 %1585
      %1587 = vrot.lane.b32.xlu0 %v1582, 125
      %v1588 = vpop.permute.xlu0 %1587
      %vm1589 = vcmask 1022976
      %v1590 = vsel %vm1589, %v1584, %v1586
      %v1591 = vsel %vm1589, %v1586, %v1588
      %v1594 = vsel %vm1578, %v1590, 0.0
      %v1595 = vsel %vm1579, %v1591, 0.0
      %vm1596 = vcmp.eq.s32.totalorder %v697, 1
      %vm1597 = vcmp.eq.s32.totalorder %v698, 1
      %v1600 = vrot.slane %v1553, 4
      %v1601 = vrot.slane %v1544, 4
      %v1602 = vrot.slane %v1556, 4
      %1603 = vrot.lane.b32.xlu0 %v1600, 127
      %v1604 = vpop.permute.xlu0 %1603
      %1605 = vrot.lane.b32.xlu0 %v1601, 127
      %v1606 = vpop.permute.xlu0 %1605
      %1607 = vrot.lane.b32.xlu0 %v1602, 127
      %v1608 = vpop.permute.xlu0 %1607
      %v1609 = vsel %vm825, %v1604, %v1606
      %v1610 = vsel %vm825, %v1606, %v1608
      %v1613 = vsel %vm1596, %v1609, 0.0
      %v1614 = vsel %vm1597, %v1610, 0.0
      %vm1615 = vcmp.ge.s32.totalorder %v477, 2
      %vm1616 = vcmp.ge.s32.totalorder %v478, 2
      %v1617 = vsel %vm1615, 1, 0
      %v1618 = vsel %vm1616, 1, 0
      %vm1619 = vcmp.eq.s32.totalorder %v1617, 1
      %vm1620 = vcmp.eq.s32.totalorder %v1618, 1
      %v1621 = vsel %vm1619, %v1554, 0.0
      %v1622 = vsel %vm1620, %v1545, 0.0
      %v1625 = vrot.slane %v1594, 4
      %v1626 = vrot.slane %v1595, 4
      %1629 = vrot.lane.b32.xlu0 %v1553, 126
      %v1630 = vpop.permute.xlu0 %1629
      %1631 = vrot.lane.b32.xlu0 %v1544, 126
      %v1632 = vpop.permute.xlu0 %1631
      %1633 = vrot.lane.b32.xlu0 %v1556, 126
      %v1634 = vpop.permute.xlu0 %1633
      %v1635 = vsel %vm912, %v1630, %v1632
      %v1636 = vsel %vm912, %v1632, %v1634
      %v1641 = vrot.slane %v1613, 4
      %v1642 = vrot.slane %v1614, 4
      %v1645 = vsel %vm341, %v1576, %v1625
      %v1646 = vsel %vm341, %v1577, %v1626
      %v1647 = vsel %vm341, %v1635, %v1641
      %v1648 = vsel %vm341, %v1636, %v1642
      %v1649 = vld [vmem:[%s7] sm:$0xf]
      %v1650 = vld [vmem:[%s7 + $0x4] sm:$0xf]
      %v1651 = vld [vmem:[%s7 + $0x8] sm:$0x3]
      %v1652 = vpack.c.bf16 %v1647, %v1645
      %v1653 = vpack.c.bf16 %v1648, %v1646
      %v1654 = vpack.c.bf16 %v1621, %v1621
      %v1655 = vpack.c.bf16 %v1622, %v1622
      %v1656 = vld [vmem:[%s8] sm:$0xff]
      %v1657 = vld [vmem:[%s8 + $0x8] sm:$0xff]
      %v1658 = vld [vmem:[%s8 + $0x10] sm:$0xf]
      %1660 = vset.pattern.permute.xlu0 0
      %1661 = vperm.xlu0 %1660, %v1656
      %v1662 = vpop.permute.xlu0 %1661
      %1665 = vset.pattern.permute.xlu0 0
      %1666 = vperm.xlu0 %1665, %v1657
      %v1667 = vpop.permute.xlu0 %1666
      %1670 = vset.pattern.permute.xlu0 0
      %1671 = vperm.xlu0 %1670, %v1658
      %v1672 = vpop.permute.xlu0 %1671
      %v1677 = vunpack.c.l.b16 %v1649
      %v1678 = vunpack.c.l.b16 %v1650
      %v1679 = vunpack.c.l.b16 %v1651
      %v1680 = vpack.c.b16 %v1678, %v1677
      %v1681 = vpack.c.b16 %v1679, %v1679
      %v1683 = vsel %vm627, %v1680, 0
      %v1686 = vsel %vm627, %v1681, 0
      %v1689 = vsel %vm634, %v1654, 0
      %v1692 = vsel %vm634, %v1655, 0
      %1694 = vmatprep.subr.bf16.mxu0 0
      %1695 = vmatpush1.bf16.msra.mxu0 0
      %1696 = vmatprep.subr.bf16.mxu0 0
      %1697 = vmatpush1.bf16.msra.mxu0 0
      %1698 = vmatprep.subr.bf16.mxu0 0
      %1699 = vmatpush1.bf16.msra.mxu0 0
      %1700 = vmatprep.subr.bf16.mxu0 0
      %1701 = vmatpush1.bf16.msra.mxu0 0
      %1702 = vmatprep.subr.bf16.mxu0 0
      %1703 = vmatpush1.bf16.msra.mxu0 0
      %1704 = vmatprep.subr.bf16.mxu0 0
      %1705 = vmatpush1.bf16.msra.mxu0 0
      %1706 = vmatprep.subr.bf16.mxu0 %v1692
      %1707 = vmatpush1.bf16.msra.mxu0 %v1689
      %1708 = vmatprep.subr.bf16.mxu0 %v1653
      %1709 = vmatpush1.bf16.msra.mxu0 %v1652
      %1710 = vmatprep.subr.bf16.mxu0 0
      %1711 = vmatpush2.bf16.msra.mxu0 0
      %1712 = vmatprep.subr.bf16.mxu0 0
      %1713 = vmatpush2.bf16.msra.mxu0 0
      %1714 = vmatprep.subr.bf16.mxu0 0
      %1715 = vmatpush2.bf16.msra.mxu0 0
      %1716 = vmatprep.subr.bf16.mxu0 0
      %1717 = vmatpush2.bf16.msra.mxu0 0
      %1718 = vmatprep.subr.bf16.mxu0 0
      %1719 = vmatpush2.bf16.msra.mxu0 0
      %1720 = vmatprep.subr.bf16.mxu0 0
      %1721 = vmatpush2.bf16.msra.mxu0 0
      %1722 = vmatprep.subr.bf16.mxu0 0
      %1723 = vmatpush2.bf16.msra.mxu0 0
      %1724 = vmatprep.subr.bf16.mxu0 0
      %1725 = vmatpush2.bf16.msra.mxu0 0
      %1726 = vmatprep.mubr.bf16.mxu0 0
      %1727 = vmatmul.mubr.bf16.gmra.mxu0 %v1683
      %v1728 = vpop.f32.mrf.mxu0
      %v1729 = vadd.f32 %v1662, %v1728
      %v1730 = vpop.f32.mrf.mxu0
      %v1731 = vadd.f32 %v1662, %v1730
      %v1732 = vpop.f32.mrf.mxu0
      %v1733 = vadd.f32 %v1667, %v1732
      %v1734 = vpop.f32.mrf.mxu0
      %v1735 = vadd.f32 %v1667, %v1734
      %1736 = vmatprep.mubr.bf16.mxu0 0
      %1737 = vmatmul.mubr.bf16.gmra.mxu0 %v1686
      %v1738 = vpop.f32.mrf.mxu0
      %v1739 = vadd.f32 %v1672, %v1738
      %v1740 = vpop.f32.mrf.mxu0
      %v1741 = vadd.f32 %v1672, %v1740
      %v1742 = vpop.f32.mrf.mxu0
      %v1743 = vpop.f32.mrf.mxu0
      %1744 = vdwg.mxu0
      %v1745 = vadd.f32 %v334, %v1729
      %v1746 = vadd.f32 %v335, %v1731
      %v1747 = vadd.f32 %v336, %v1733
      %v1748 = vadd.f32 %v337, %v1735
      %v1749 = vadd.f32 %v338, %v1739
      %v1750 = vadd.f32 %v339, %v1741
      %1751 = vst [vmem:[%s332] sm:$0xff] %v1745
      %1752 = vst [vmem:[%s332 + $0x8] sm:$0xff] %v1746
      %1753 = vst [vmem:[%s332 + $0x10] sm:$0xff] %v1747
      %1754 = vst [vmem:[%s332 + $0x18] sm:$0xff] %v1748
      %1755 = vst [vmem:[%s332 + $0x20] sm:$0xf] %v1749
      %1756 = vst [vmem:[%s332 + $0x28] sm:$0xf] %v1750
      %p1757 = scmp.lt.s32.totalorder %s20, 1
      %s1758 = scalar_select %p1757, %s20, 1
      %s1759 = smul.addr %s1758, 6
      %s1760 = smul.addr %s1759, 8
      %s1761 = scalar_lea.vmem %s9, %s1760
      // Predicated region
      $region57: #{tpu_custom_call.1} parent=55 // pred_check
        %p1762 = pneg %p232
      $region58: #{tpu_custom_call.1} parent=55 // pred_check_branch
        %1764 = sbr.rel (%p1762) target = $region60
      $region59: #{tpu_custom_call.1} parent=55 // pred_region
        _
      $region60: #{tpu_custom_call.1} parent=55 // pred_fallthru
        _
    $region56: #{tpu_custom_call.1} parent=5 // pred_fallthru
      _
    %p1765 = scmp.le.s32.totalorder 2, %s15
    // Predicated region
    $region61: #{tpu_custom_call.1} parent=5 // pred_check
      %p1766 = pneg %p1765
    $region62: #{tpu_custom_call.1} parent=5 // pred_check_branch
      %1768 = sbr.rel (%p1766) target = $region64
    $region63: #{tpu_custom_call.1} parent=5 // pred_region
      %s1769 = ssub.s32 %s15, 2
      // Predicated region
      $region65: #{tpu_custom_call.1} parent=63 // pred_check
        %p1770 = pneg %p238
      $region66: #{tpu_custom_call.1} parent=63 // pred_check_branch
        %1772 = sbr.rel (%p1770) target = $region68
      $region67: #{tpu_custom_call.1} parent=63 // pred_region
        %p1773 = scmp.lt.s32.totalorder %s21, 1
        %s1774 = scalar_select %p1773, %s21, 1
        %s1775 = smul.addr %s1774, 6
        %s1776 = smul.addr %s1775, 8
        %s1777 = scalar_lea.vmem %s9, %s1776
      $region68: #{tpu_custom_call.1} parent=63 // pred_fallthru
        _
    $region64: #{tpu_custom_call.1} parent=5 // pred_fallthru
      _
  $region6: #{tpu_custom_call.1} parent=0 // loop_footer
    %s19 = sadd.s32 1, %s15
  $region7: #{tpu_custom_call.1} parent=0 // loop_footer_branch
    %14 = sbr.rel target = $region3
  $region8: #{tpu_custom_call.1} parent=0 // loop_exit
    _

</llo_original>
